<compile_context>
chip_gen: v7x
topology: tpu7x:2x2x1
jax: 0.10.0
libtpu: 0.0.40
codegen_flags: <defaults>
</compile_context>

<pallas_src>
import functools

import jax
import jax.numpy as jnp
from jax import lax
from jax.experimental import pallas as pl
from jax.experimental.pallas import tpu as pltpu

KSIZE = 4  # conv kernel size (fixed by the module)


def _choose_tile_rows(Ho, Wo, target_m=1024, max_m=2048):
    """Row-tile size tr: tr | Ho, tile_M = tr*Wo a multiple of 8 and <= max_m."""
    cands = [tr for tr in range(1, Ho + 1)
             if Ho % tr == 0 and (tr * Wo) % 8 == 0 and tr * Wo <= max_m]
    if not cands:
        return Ho                      # fall back to whole image per step
    return min(cands, key=lambda tr: abs(tr * Wo - target_m))


def _downsample_conv_kernel(x_ref, w_ref, b_ref, o_ref, *, tr, Wo, Cin):
    """One (batch, row-tile) step: grouped-tap MXU matmuls + bias.

    x_ref: (2, 2, tr+1, Wo+1, Cin) bf16 phase-split, zero-padded, haloed tile:
           x_ref[rh, rw, i, j, c] == x_pad[c, 2*(row0 + i) + rh, 2*j + rw]
    w_ref: (16*Cin, Cout) bf16 with row (kh*4 + kw)*Cin + ci == w[co, ci, kh, kw]
    b_ref: (1, Cout) f32
    o_ref: (tr*Wo, Cout)
    """
    M = tr * Wo
    acc = None
    for kh in range(KSIZE):                      # 4 tap groups, K = 4*Cin each
        ah, rh = divmod(kh, 2)
        slabs = []
        for kw in range(KSIZE):
            aw, rw = divmod(kw, 2)
            # Static slices: height shift on an untiled dim, width shift on the
            # sublane dim, full Cin on lanes. Reshape only merges leading dims
            # (free when Wo is a multiple of the sublane tile).
            slab = x_ref[rh, rw, ah:ah + tr, aw:aw + Wo, :]       # (tr, Wo, Cin)
            slabs.append(slab.reshape(M, Cin))
        grp = jnp.concatenate(slabs, axis=-1)                     # (M, 4*Cin) bf16
        part = jnp.dot(grp,
                       w_ref[kh * KSIZE * Cin:(kh + 1) * KSIZE * Cin, :],
                       preferred_element_type=jnp.float32)        # (M, Cout) f32
        acc = part if acc is None else acc + part
    o_ref[...] = (acc + b_ref[...]).astype(o_ref.dtype)


def downsample_conv(x, weight, bias):
    """Conv2d(dim, dim, kernel_size=4, stride=2, padding=1) forward (NCHW)."""
    B, Cin, H, W = x.shape
    Cout = weight.shape[0]
    assert weight.shape == (Cout, Cin, KSIZE, KSIZE)
    # TODO(synk): odd H/W would need an extra edge phase; UNet downsampling
    # always sees even spatial dims, so we assert evenness here.
    assert H % 2 == 0 and W % 2 == 0
    Ho, Wo = H // 2, W // 2
    H2, W2 = Ho + 1, Wo + 1

    tr = _choose_tile_rows(Ho, Wo)
    n_t = Ho // tr

    # Single wrapper layout pass (bf16 cast folded in, so it is half-width):
    # zero pad, de-interleave the two stride-2 phases per spatial axis, move
    # channels last, and cut row tiles WITH their 1-row halo so every kernel
    # input block is a plain non-overlapping Blocked tile.
    x_bf = x.astype(jnp.bfloat16)
    x_pad = jnp.pad(x_bf, ((0, 0), (0, 0), (1, 1), (1, 1)))
    x_ph = x_pad.reshape(B, Cin, H2, 2, W2, 2).transpose(0, 3, 5, 2, 4, 1)
    # x_ph[b, rh, rw, i, j, c] == x_pad[b, c, 2*i + rh, 2*j + rw]
    row_idx = jnp.arange(n_t)[:, None] * tr + jnp.arange(tr + 1)[None, :]
    x_tiles = x_ph[:, :, :, row_idx]                  # (B, 2, 2, n_t, tr+1, W2, Cin)
    x_tiles = x_tiles.transpose(0, 3, 1, 2, 4, 5, 6)  # (B, n_t, 2, 2, tr+1, W2, Cin)

    w_r = jnp.transpose(weight, (2, 3, 1, 0)).reshape(
        KSIZE * KSIZE * Cin, Cout).astype(jnp.bfloat16)
    b_r = bias.reshape(1, Cout).astype(jnp.float32)

    kernel = functools.partial(_downsample_conv_kernel, tr=tr, Wo=Wo, Cin=Cin)

    out = pl.pallas_call(
        kernel,
        out_shape=jax.ShapeDtypeStruct((B, Ho * Wo, Cout), x.dtype),
        grid_spec=pltpu.PrefetchScalarGridSpec(
            num_scalar_prefetch=0,
            grid=(B, n_t),   # both axes parallel -> megacore can split either
            in_specs=[
                pl.BlockSpec((None, None, 2, 2, tr + 1, W2, Cin),
                             lambda b, t: (b, t, 0, 0, 0, 0, 0)),   # x tile
                pl.BlockSpec((KSIZE * KSIZE * Cin, Cout),
                             lambda b, t: (0, 0)),                  # weight (resident)
                pl.BlockSpec((1, Cout), lambda b, t: (0, 0)),       # bias (resident)
            ],
            out_specs=pl.BlockSpec((None, tr * Wo, Cout),
                                   lambda b, t: (b, t, 0)),
        ),
        compiler_params=pltpu.CompilerParams(
            dimension_semantics=("parallel", "parallel")),
    )(x_tiles, w_r, b_r)

    # TODO(synk): if a very large Cout (>=512) ever shows up, add an N (Cout)
    # grid axis so the resident weight tile stays small on v7x's 64 MiB VMEM.
    # (B, Ho*Wo, Cout) -> NCHW. Drop this transpose if the consumer takes NHWC.
    return out.reshape(B, Ho, Wo, Cout).transpose(0, 3, 1, 2)


def downsample_conv_reference(x, weight, bias):
    """Pure-JAX (XLA conv) reference mirroring the PyTorch module in f32."""
    out = lax.conv_general_dilated(
        x.astype(jnp.float32), weight.astype(jnp.float32),
        window_strides=(2, 2), padding=((1, 1), (1, 1)),
        dimension_numbers=('NCHW', 'OIHW', 'NCHW'))
    out = out + bias.astype(jnp.float32)[None, :, None, None]
    return out.astype(x.dtype)


if __name__ == "__main__":
    # Module hyperparameters (PyTorch: DownsampleConv(dim=4)), small test shapes.
    dim = 4
    B, H, W = 2, 16, 16

    key = jax.random.PRNGKey(0)
    k_x, k_w, k_b = jax.random.split(key, 3)

    x = jax.random.normal(k_x, (B, dim, H, W), dtype=jnp.float32)
    # PyTorch Conv2d default init: U(-1/sqrt(fan_in), 1/sqrt(fan_in))
    fan_in = dim * KSIZE * KSIZE
    bound = 1.0 / (fan_in ** 0.5)
    weight = jax.random.uniform(k_w, (dim, dim, KSIZE, KSIZE), jnp.float32,
                                -bound, bound)
    bias = jax.random.uniform(k_b, (dim,), jnp.float32, -bound, bound)

    y = downsample_conv(x, weight, bias)
    y = jax.block_until_ready(y)

    y_ref = downsample_conv_reference(x, weight, bias)
    assert y.shape == (B, dim, H // 2, W // 2)
    max_err = jnp.max(jnp.abs(y - y_ref))
    # bf16 MXU operands with f32 accumulation vs f32 reference -> loose-ish tol.
    assert jnp.allclose(y, y_ref, atol=3e-2, rtol=3e-2), f"max abs err {max_err}"

    print("KERNEL_OK")
</pallas_src>

<mosaic_0001>
module attributes {stable_mosaic.version = 11 : i64} {
  func.func @_downsample_conv_kernel(%arg0: i32, %arg1: i32, %arg2: memref<1x1x2x2x9x9x4xbf16, #tpu.memory_space<vmem>>, %arg3: memref<64x4xbf16, #tpu.memory_space<vmem>>, %arg4: memref<1x4xf32, #tpu.memory_space<vmem>>, %arg5: memref<1x64x4xf32, #tpu.memory_space<vmem>>) attributes {dimension_semantics = [#tpu.dimension_semantics<parallel>, #tpu.dimension_semantics<parallel>], iteration_bounds = array<i64: 2, 1>, scalar_prefetch = 0 : i64, scratch_operands = 0 : i64, tpu.core_type = #tpu.core_type<tc>, window_params = [{transform_indices = @transform_0, window_bounds = array<i64: 1, 1, 2, 2, 9, 9, 4>}, {pipeline_mode = #tpu.pipeline_mode<synchronous>, transform_indices = @transform_1, window_bounds = array<i64: 64, 4>}, {pipeline_mode = #tpu.pipeline_mode<synchronous>, transform_indices = @transform_2, window_bounds = array<i64: 1, 4>}, {transform_indices = @transform_3, window_bounds = array<i64: 1, 64, 4>}]} {
    %c0 = arith.constant 0 : index
    %c0_0 = arith.constant 0 : index
    %c0_1 = arith.constant 0 : index
    %c0_2 = arith.constant 0 : index
    %c0_3 = arith.constant 0 : index
    %c0_4 = arith.constant 0 : index
    %c0_5 = arith.constant 0 : index
    %0 = vector.load %arg2[%c0, %c0_0, %c0_1, %c0_2, %c0_3, %c0_4, %c0_5] : memref<1x1x2x2x9x9x4xbf16, #tpu.memory_space<vmem>>, vector<1x1x1x1x8x8x4xbf16>
    %1 = vector.shape_cast %0 : vector<1x1x1x1x8x8x4xbf16> to vector<8x8x4xbf16>
    %2 = vector.shape_cast %1 : vector<8x8x4xbf16> to vector<64x4xbf16>
    %c0_6 = arith.constant 0 : index
    %c0_7 = arith.constant 0 : index
    %c0_8 = arith.constant 0 : index
    %c1 = arith.constant 1 : index
    %c0_9 = arith.constant 0 : index
    %c0_10 = arith.constant 0 : index
    %c0_11 = arith.constant 0 : index
    %3 = vector.load %arg2[%c0_6, %c0_7, %c0_8, %c1, %c0_9, %c0_10, %c0_11] : memref<1x1x2x2x9x9x4xbf16, #tpu.memory_space<vmem>>, vector<1x1x1x1x8x8x4xbf16>
    %4 = vector.shape_cast %3 : vector<1x1x1x1x8x8x4xbf16> to vector<8x8x4xbf16>
    %5 = vector.shape_cast %4 : vector<8x8x4xbf16> to vector<64x4xbf16>
    %c0_12 = arith.constant 0 : index
    %c0_13 = arith.constant 0 : index
    %c0_14 = arith.constant 0 : index
    %c0_15 = arith.constant 0 : index
    %c0_16 = arith.constant 0 : index
    %c1_17 = arith.constant 1 : index
    %c0_18 = arith.constant 0 : index
    %6 = vector.load %arg2[%c0_12, %c0_13, %c0_14, %c0_15, %c0_16, %c1_17, %c0_18] : memref<1x1x2x2x9x9x4xbf16, #tpu.memory_space<vmem>>, vector<1x1x1x1x8x8x4xbf16>
    %7 = vector.shape_cast %6 : vector<1x1x1x1x8x8x4xbf16> to vector<8x8x4xbf16>
    %8 = vector.shape_cast %7 : vector<8x8x4xbf16> to vector<64x4xbf16>
    %c0_19 = arith.constant 0 : index
    %c0_20 = arith.constant 0 : index
    %c0_21 = arith.constant 0 : index
    %c1_22 = arith.constant 1 : index
    %c0_23 = arith.constant 0 : index
    %c1_24 = arith.constant 1 : index
    %c0_25 = arith.constant 0 : index
    %9 = vector.load %arg2[%c0_19, %c0_20, %c0_21, %c1_22, %c0_23, %c1_24, %c0_25] : memref<1x1x2x2x9x9x4xbf16, #tpu.memory_space<vmem>>, vector<1x1x1x1x8x8x4xbf16>
    %10 = vector.shape_cast %9 : vector<1x1x1x1x8x8x4xbf16> to vector<8x8x4xbf16>
    %11 = vector.shape_cast %10 : vector<8x8x4xbf16> to vector<64x4xbf16>
    %12 = tpu.concatenate %2, %5, %8, %11 in 1 : vector<64x4xbf16>, vector<64x4xbf16>, vector<64x4xbf16>, vector<64x4xbf16> -> vector<64x16xbf16>
    %c0_26 = arith.constant 0 : index
    %c0_27 = arith.constant 0 : index
    %13 = vector.load %arg3[%c0_26, %c0_27] : memref<64x4xbf16, #tpu.memory_space<vmem>>, vector<16x4xbf16>
    %cst = arith.constant dense<0.000000e+00> : vector<64x4xf32>
    %14 = tpu.matmul %12, %13, %cst {dimension_numbers = #tpu.dot_dimension_numbers<[1], [0], [0], [1], [0, 0, 1, 1], [], []>} : vector<64x16xbf16>, vector<16x4xbf16>, vector<64x4xf32> -> vector<64x4xf32>
    %c0_28 = arith.constant 0 : index
    %c0_29 = arith.constant 0 : index
    %c1_30 = arith.constant 1 : index
    %c0_31 = arith.constant 0 : index
    %c0_32 = arith.constant 0 : index
    %c0_33 = arith.constant 0 : index
    %c0_34 = arith.constant 0 : index
    %15 = vector.load %arg2[%c0_28, %c0_29, %c1_30, %c0_31, %c0_32, %c0_33, %c0_34] : memref<1x1x2x2x9x9x4xbf16, #tpu.memory_space<vmem>>, vector<1x1x1x1x8x8x4xbf16>
    %16 = vector.shape_cast %15 : vector<1x1x1x1x8x8x4xbf16> to vector<8x8x4xbf16>
    %17 = vector.shape_cast %16 : vector<8x8x4xbf16> to vector<64x4xbf16>
    %c0_35 = arith.constant 0 : index
    %c0_36 = arith.constant 0 : index
    %c1_37 = arith.constant 1 : index
    %c1_38 = arith.constant 1 : index
    %c0_39 = arith.constant 0 : index
    %c0_40 = arith.constant 0 : index
    %c0_41 = arith.constant 0 : index
    %18 = vector.load %arg2[%c0_35, %c0_36, %c1_37, %c1_38, %c0_39, %c0_40, %c0_41] : memref<1x1x2x2x9x9x4xbf16, #tpu.memory_space<vmem>>, vector<1x1x1x1x8x8x4xbf16>
    %19 = vector.shape_cast %18 : vector<1x1x1x1x8x8x4xbf16> to vector<8x8x4xbf16>
    %20 = vector.shape_cast %19 : vector<8x8x4xbf16> to vector<64x4xbf16>
    %c0_42 = arith.constant 0 : index
    %c0_43 = arith.constant 0 : index
    %c1_44 = arith.constant 1 : index
    %c0_45 = arith.constant 0 : index
    %c0_46 = arith.constant 0 : index
    %c1_47 = arith.constant 1 : index
    %c0_48 = arith.constant 0 : index
    %21 = vector.load %arg2[%c0_42, %c0_43, %c1_44, %c0_45, %c0_46, %c1_47, %c0_48] : memref<1x1x2x2x9x9x4xbf16, #tpu.memory_space<vmem>>, vector<1x1x1x1x8x8x4xbf16>
    %22 = vector.shape_cast %21 : vector<1x1x1x1x8x8x4xbf16> to vector<8x8x4xbf16>
    %23 = vector.shape_cast %22 : vector<8x8x4xbf16> to vector<64x4xbf16>
    %c0_49 = arith.constant 0 : index
    %c0_50 = arith.constant 0 : index
    %c1_51 = arith.constant 1 : index
    %c1_52 = arith.constant 1 : index
    %c0_53 = arith.constant 0 : index
    %c1_54 = arith.constant 1 : index
    %c0_55 = arith.constant 0 : index
    %24 = vector.load %arg2[%c0_49, %c0_50, %c1_51, %c1_52, %c0_53, %c1_54, %c0_55] : memref<1x1x2x2x9x9x4xbf16, #tpu.memory_space<vmem>>, vector<1x1x1x1x8x8x4xbf16>
    %25 = vector.shape_cast %24 : vector<1x1x1x1x8x8x4xbf16> to vector<8x8x4xbf16>
    %26 = vector.shape_cast %25 : vector<8x8x4xbf16> to vector<64x4xbf16>
    %27 = tpu.concatenate %17, %20, %23, %26 in 1 : vector<64x4xbf16>, vector<64x4xbf16>, vector<64x4xbf16>, vector<64x4xbf16> -> vector<64x16xbf16>
    %c16 = arith.constant 16 : index
    %c0_56 = arith.constant 0 : index
    %28 = vector.load %arg3[%c16, %c0_56] : memref<64x4xbf16, #tpu.memory_space<vmem>>, vector<16x4xbf16>
    %cst_57 = arith.constant dense<0.000000e+00> : vector<64x4xf32>
    %29 = tpu.matmul %27, %28, %cst_57 {dimension_numbers = #tpu.dot_dimension_numbers<[1], [0], [0], [1], [0, 0, 1, 1], [], []>} : vector<64x16xbf16>, vector<16x4xbf16>, vector<64x4xf32> -> vector<64x4xf32>
    %30 = arith.addf %14, %29 : vector<64x4xf32>
    %c0_58 = arith.constant 0 : index
    %c0_59 = arith.constant 0 : index
    %c0_60 = arith.constant 0 : index
    %c0_61 = arith.constant 0 : index
    %c1_62 = arith.constant 1 : index
    %c0_63 = arith.constant 0 : index
    %c0_64 = arith.constant 0 : index
    %31 = vector.load %arg2[%c0_58, %c0_59, %c0_60, %c0_61, %c1_62, %c0_63, %c0_64] : memref<1x1x2x2x9x9x4xbf16, #tpu.memory_space<vmem>>, vector<1x1x1x1x8x8x4xbf16>
    %32 = vector.shape_cast %31 : vector<1x1x1x1x8x8x4xbf16> to vector<8x8x4xbf16>
    %33 = vector.shape_cast %32 : vector<8x8x4xbf16> to vector<64x4xbf16>
    %c0_65 = arith.constant 0 : index
    %c0_66 = arith.constant 0 : index
    %c0_67 = arith.constant 0 : index
    %c1_68 = arith.constant 1 : index
    %c1_69 = arith.constant 1 : index
    %c0_70 = arith.constant 0 : index
    %c0_71 = arith.constant 0 : index
    %34 = vector.load %arg2[%c0_65, %c0_66, %c0_67, %c1_68, %c1_69, %c0_70, %c0_71] : memref<1x1x2x2x9x9x4xbf16, #tpu.memory_space<vmem>>, vector<1x1x1x1x8x8x4xbf16>
    %35 = vector.shape_cast %34 : vector<1x1x1x1x8x8x4xbf16> to vector<8x8x4xbf16>
    %36 = vector.shape_cast %35 : vector<8x8x4xbf16> to vector<64x4xbf16>
    %c0_72 = arith.constant 0 : index
    %c0_73 = arith.constant 0 : index
    %c0_74 = arith.constant 0 : index
    %c0_75 = arith.constant 0 : index
    %c1_76 = arith.constant 1 : index
    %c1_77 = arith.constant 1 : index
    %c0_78 = arith.constant 0 : index
    %37 = vector.load %arg2[%c0_72, %c0_73, %c0_74, %c0_75, %c1_76, %c1_77, %c0_78] : memref<1x1x2x2x9x9x4xbf16, #tpu.memory_space<vmem>>, vector<1x1x1x1x8x8x4xbf16>
    %38 = vector.shape_cast %37 : vector<1x1x1x1x8x8x4xbf16> to vector<8x8x4xbf16>
    %39 = vector.shape_cast %38 : vector<8x8x4xbf16> to vector<64x4xbf16>
    %c0_79 = arith.constant 0 : index
    %c0_80 = arith.constant 0 : index
    %c0_81 = arith.constant 0 : index
    %c1_82 = arith.constant 1 : index
    %c1_83 = arith.constant 1 : index
    %c1_84 = arith.constant 1 : index
    %c0_85 = arith.constant 0 : index
    %40 = vector.load %arg2[%c0_79, %c0_80, %c0_81, %c1_82, %c1_83, %c1_84, %c0_85] : memref<1x1x2x2x9x9x4xbf16, #tpu.memory_space<vmem>>, vector<1x1x1x1x8x8x4xbf16>
    %41 = vector.shape_cast %40 : vector<1x1x1x1x8x8x4xbf16> to vector<8x8x4xbf16>
    %42 = vector.shape_cast %41 : vector<8x8x4xbf16> to vector<64x4xbf16>
    %43 = tpu.concatenate %33, %36, %39, %42 in 1 : vector<64x4xbf16>, vector<64x4xbf16>, vector<64x4xbf16>, vector<64x4xbf16> -> vector<64x16xbf16>
    %c32 = arith.constant 32 : index
    %c0_86 = arith.constant 0 : index
    %44 = vector.load %arg3[%c32, %c0_86] : memref<64x4xbf16, #tpu.memory_space<vmem>>, vector<16x4xbf16>
    %cst_87 = arith.constant dense<0.000000e+00> : vector<64x4xf32>
    %45 = tpu.matmul %43, %44, %cst_87 {dimension_numbers = #tpu.dot_dimension_numbers<[1], [0], [0], [1], [0, 0, 1, 1], [], []>} : vector<64x16xbf16>, vector<16x4xbf16>, vector<64x4xf32> -> vector<64x4xf32>
    %46 = arith.addf %30, %45 : vector<64x4xf32>
    %c0_88 = arith.constant 0 : index
    %c0_89 = arith.constant 0 : index
    %c1_90 = arith.constant 1 : index
    %c0_91 = arith.constant 0 : index
    %c1_92 = arith.constant 1 : index
    %c0_93 = arith.constant 0 : index
    %c0_94 = arith.constant 0 : index
    %47 = vector.load %arg2[%c0_88, %c0_89, %c1_90, %c0_91, %c1_92, %c0_93, %c0_94] : memref<1x1x2x2x9x9x4xbf16, #tpu.memory_space<vmem>>, vector<1x1x1x1x8x8x4xbf16>
    %48 = vector.shape_cast %47 : vector<1x1x1x1x8x8x4xbf16> to vector<8x8x4xbf16>
    %49 = vector.shape_cast %48 : vector<8x8x4xbf16> to vector<64x4xbf16>
    %c0_95 = arith.constant 0 : index
    %c0_96 = arith.constant 0 : index
    %c1_97 = arith.constant 1 : index
    %c1_98 = arith.constant 1 : index
    %c1_99 = arith.constant 1 : index
    %c0_100 = arith.constant 0 : index
    %c0_101 = arith.constant 0 : index
    %50 = vector.load %arg2[%c0_95, %c0_96, %c1_97, %c1_98, %c1_99, %c0_100, %c0_101] : memref<1x1x2x2x9x9x4xbf16, #tpu.memory_space<vmem>>, vector<1x1x1x1x8x8x4xbf16>
    %51 = vector.shape_cast %50 : vector<1x1x1x1x8x8x4xbf16> to vector<8x8x4xbf16>
    %52 = vector.shape_cast %51 : vector<8x8x4xbf16> to vector<64x4xbf16>
    %c0_102 = arith.constant 0 : index
    %c0_103 = arith.constant 0 : index
    %c1_104 = arith.constant 1 : index
    %c0_105 = arith.constant 0 : index
    %c1_106 = arith.constant 1 : index
    %c1_107 = arith.constant 1 : index
    %c0_108 = arith.constant 0 : index
    %53 = vector.load %arg2[%c0_102, %c0_103, %c1_104, %c0_105, %c1_106, %c1_107, %c0_108] : memref<1x1x2x2x9x9x4xbf16, #tpu.memory_space<vmem>>, vector<1x1x1x1x8x8x4xbf16>
    %54 = vector.shape_cast %53 : vector<1x1x1x1x8x8x4xbf16> to vector<8x8x4xbf16>
    %55 = vector.shape_cast %54 : vector<8x8x4xbf16> to vector<64x4xbf16>
    %c0_109 = arith.constant 0 : index
    %c0_110 = arith.constant 0 : index
    %c1_111 = arith.constant 1 : index
    %c1_112 = arith.constant 1 : index
    %c1_113 = arith.constant 1 : index
    %c1_114 = arith.constant 1 : index
    %c0_115 = arith.constant 0 : index
    %56 = vector.load %arg2[%c0_109, %c0_110, %c1_111, %c1_112, %c1_113, %c1_114, %c0_115] : memref<1x1x2x2x9x9x4xbf16, #tpu.memory_space<vmem>>, vector<1x1x1x1x8x8x4xbf16>
    %57 = vector.shape_cast %56 : vector<1x1x1x1x8x8x4xbf16> to vector<8x8x4xbf16>
    %58 = vector.shape_cast %57 : vector<8x8x4xbf16> to vector<64x4xbf16>
    %59 = tpu.concatenate %49, %52, %55, %58 in 1 : vector<64x4xbf16>, vector<64x4xbf16>, vector<64x4xbf16>, vector<64x4xbf16> -> vector<64x16xbf16>
    %c48 = arith.constant 48 : index
    %c0_116 = arith.constant 0 : index
    %60 = vector.load %arg3[%c48, %c0_116] : memref<64x4xbf16, #tpu.memory_space<vmem>>, vector<16x4xbf16>
    %cst_117 = arith.constant dense<0.000000e+00> : vector<64x4xf32>
    %61 = tpu.matmul %59, %60, %cst_117 {dimension_numbers = #tpu.dot_dimension_numbers<[1], [0], [0], [1], [0, 0, 1, 1], [], []>} : vector<64x16xbf16>, vector<16x4xbf16>, vector<64x4xf32> -> vector<64x4xf32>
    %62 = arith.addf %46, %61 : vector<64x4xf32>
    %c0_118 = arith.constant 0 : index
    %c0_119 = arith.constant 0 : index
    %63 = vector.load %arg4[%c0_118, %c0_119] : memref<1x4xf32, #tpu.memory_space<vmem>>, vector<1x4xf32>
    %64 = vector.broadcast %63 : vector<1x4xf32> to vector<64x4xf32>
    %65 = arith.addf %62, %64 : vector<64x4xf32>
    %c0_120 = arith.constant 0 : index
    %c0_121 = arith.constant 0 : index
    %c0_122 = arith.constant 0 : index
    %66 = vector.load %arg5[%c0_120, %c0_121, %c0_122] : memref<1x64x4xf32, #tpu.memory_space<vmem>>, vector<1x64x4xf32>
    %67 = vector.shape_cast %66 : vector<1x64x4xf32> to vector<64x4xf32>
    %68 = vector.shape_cast %65 : vector<64x4xf32> to vector<1x64x4xf32>
    tpu.vector_store %arg5[%c0_120, %c0_121, %c0_122], %68 {strides = array<i32>} : memref<1x64x4xf32, #tpu.memory_space<vmem>>, vector<1x64x4xf32>,
    return
  }
  func.func @transform_0(%arg0: i32, %arg1: i32) -> (i32, i32, i32, i32, i32, i32, i32) {
    %c0_i32 = arith.constant 0 : i32
    %c0_i32_0 = arith.constant 0 : i32
    %c0_i32_1 = arith.constant 0 : i32
    %c0_i32_2 = arith.constant 0 : i32
    %c0_i32_3 = arith.constant 0 : i32
    %c0_i32_4 = arith.constant 0 : i32
    return %arg0, %arg1, %c0_i32, %c0_i32_0, %c0_i32_1, %c0_i32_2, %c0_i32_3 : i32, i32, i32, i32, i32, i32, i32
  }
  func.func @transform_1(%arg0: i32, %arg1: i32) -> (i32, i32) {
    %c0_i32 = arith.constant 0 : i32
    %c0_i32_0 = arith.constant 0 : i32
    %c0_i32_1 = arith.constant 0 : i32
    return %c0_i32, %c0_i32_0 : i32, i32
  }
  func.func @transform_2(%arg0: i32, %arg1: i32) -> (i32, i32) {
    %c0_i32 = arith.constant 0 : i32
    %c0_i32_0 = arith.constant 0 : i32
    %c0_i32_1 = arith.constant 0 : i32
    return %c0_i32, %c0_i32_0 : i32, i32
  }
  func.func @transform_3(%arg0: i32, %arg1: i32) -> (i32, i32, i32) {
    %c0_i32 = arith.constant 0 : i32
    %c0_i32_0 = arith.constant 0 : i32
    return %arg0, %arg1, %c0_i32 : i32, i32, i32
  }
}

</mosaic_0001>

<llo_original>
// kernel: tpu_custom_call.1
$region0: #{tpu_custom_call.1}
  #allocation0 [shape = 'u32[]', space=smem, size = 0x4, offset = 0x4, fixed_abs, tag = 'smem constant byte address 0x4 - core index']
  #allocation1 [shape = 'u32[144,128]{1,0:T(1,128)}', space=vmem, size = 0x12000, scoped, tag = 'internal scratch']
  %s0 = inlined_call_operand.vmem [shape: bf16[2,1,2,2,9,9,4], index: 0, kind: input, shape index: {}]
  %s1 = inlined_call_operand.vmem [shape: bf16[64,4], index: 1, kind: input, shape index: {}]
  %s2 = inlined_call_operand.vmem [shape: f32[1,4], index: 2, kind: input, shape index: {}]
  %s3 = inlined_call_operand.vmem [shape: f32[2,64,4], index: 3, kind: output, shape index: {}]
  %s4 = sld [smem:[#allocation0]]
  $region45: #{tpu_custom_call.1} parent=0
    _
  %s6 = ssub.s32 1, %s4
  %s7 = scalar_select 0, %s6, %s4
  loop: start=0, step=1, limit=4
  $region2: #{tpu_custom_call.1} parent=0 // loop_pre_header
    _
  $region3: #{tpu_custom_call.1} parent=0 // loop_header
    %s9 = sphi 0, %s13
    %p10 = scmp.ge.s32.totalorder %s9, 4
    %s16 = sphi 0, %s28
    %s17 = sphi 0, %s24
    %s18 = sphi 0, %s16
    %s19 = sphi 0, %s17
    %s20 = sphi 0, %s18
    %s21 = sphi 0, %s19
    %s33 = sphi 0, %s35
    %s36 = sphi 0, %s33
    %s37 = sphi 0, %s36
    %s53 = sphi 0, %s37
    %s57 = sphi 0, %s57
    %s59 = sphi 0, %s57
    %s60 = sphi 0, %s59
    %s74 = sphi 0, %s60
    %s78 = sphi 0, %s78
    %s80 = sphi 0, %s78
    %s81 = sphi 0, %s80
    %s95 = sphi 0, %s81
    %s103 = sphi 0, %s105
    %s106 = sphi 0, %s103
    %s107 = sphi 0, %s106
    %s123 = sphi 0, %s107
  $region4: #{tpu_custom_call.1} parent=0 // loop_header_branch
    %12 = sbr.rel (%p10) target = $region8
  $region5: #{tpu_custom_call.1} parent=0 // loop_body
    %s14 = ssub.s32 %s9, 1
    %s15 = ssub.s32 %s9, 2
    %s22 = sadd.s32 1, %s17
    %p23 = scmp.ge.s32.totalorder %s22, 1
    %s24 = scalar_select %p23, 0, %s22
    %s25 = sadd.s32 1, %s16
    %s26 = scalar_select %p23, %s25, %s16
    %p27 = scmp.ge.s32.totalorder %s26, 2
    %s28 = scalar_select %p27, 0, %s26
    %s29 = ssub.s32 %s16, %s28
    %s30 = ssub.s32 %s17, %s24
    %s31 = sor.u32 %s29, %s30
    %p32 = scmp.eq.s32.totalorder %s31, 0
    %s34 = sadd.s32 %s33, 1
    %s35 = scalar_select %p32, %s33, %s34
    %p38 = pneg %p32
    %p39 = scmp.eq.s32.totalorder %s9, 1
    %p40 = por %p38, %p39
    %p41 = scmp.ne.s32.totalorder %s33, %s36
    %p42 = scmp.eq.s32.totalorder %s9, 0
    %p43 = por %p41, %p42
    %p44 = scmp.ne.s32.totalorder %s33, %s36
    %p45 = scmp.eq.s32.totalorder %s14, 1
    %p46 = por %p44, %p45
    %p47 = scmp.ne.s32.totalorder %s36, %s37
    %p48 = scmp.eq.s32.totalorder %s14, 0
    %p49 = por %p47, %p48
    %p50 = scmp.ne.s32.totalorder %s36, %s37
    %p51 = scmp.eq.s32.totalorder %s15, 1
    %p52 = por %p50, %p51
    %p54 = scmp.ne.s32.totalorder %s37, %s53
    %p55 = scmp.eq.s32.totalorder %s15, 0
    %p56 = por %p54, %p55
    %s58 = sadd.s32 %s57, 1
    %p61 = scmp.eq.s32.totalorder %s9, 1
    %p62 = scmp.ne.s32.totalorder %s57, %s59
    %p63 = scmp.eq.s32.totalorder %s9, 0
    %p64 = por %p62, %p63
    %p65 = scmp.ne.s32.totalorder %s57, %s59
    %p66 = scmp.eq.s32.totalorder %s14, 1
    %p67 = por %p65, %p66
    %p68 = scmp.ne.s32.totalorder %s59, %s60
    %p69 = scmp.eq.s32.totalorder %s14, 0
    %p70 = por %p68, %p69
    %p71 = scmp.ne.s32.totalorder %s59, %s60
    %p72 = scmp.eq.s32.totalorder %s15, 1
    %p73 = por %p71, %p72
    %p75 = scmp.ne.s32.totalorder %s60, %s74
    %p76 = scmp.eq.s32.totalorder %s15, 0
    %p77 = por %p75, %p76
    %s79 = sadd.s32 %s78, 1
    %p82 = scmp.eq.s32.totalorder %s9, 1
    %p83 = scmp.ne.s32.totalorder %s78, %s80
    %p84 = scmp.eq.s32.totalorder %s9, 0
    %p85 = por %p83, %p84
    %p86 = scmp.ne.s32.totalorder %s78, %s80
    %p87 = scmp.eq.s32.totalorder %s14, 1
    %p88 = por %p86, %p87
    %p89 = scmp.ne.s32.totalorder %s80, %s81
    %p90 = scmp.eq.s32.totalorder %s14, 0
    %p91 = por %p89, %p90
    %p92 = scmp.ne.s32.totalorder %s80, %s81
    %p93 = scmp.eq.s32.totalorder %s15, 1
    %p94 = por %p92, %p93
    %p96 = scmp.ne.s32.totalorder %s81, %s95
    %p97 = scmp.eq.s32.totalorder %s15, 0
    %p98 = por %p96, %p97
    %s99 = ssub.s32 %s16, %s28
    %s100 = ssub.s32 %s17, %s24
    %s101 = sor.u32 %s99, %s100
    %p102 = scmp.eq.s32.totalorder %s101, 0
    %s104 = sadd.s32 %s103, 1
    %s105 = scalar_select %p102, %s103, %s104
    %p108 = pneg %p102
    %p109 = scmp.eq.s32.totalorder %s9, 1
    %p110 = por %p108, %p109
    %p111 = scmp.ne.s32.totalorder %s103, %s106
    %p112 = scmp.eq.s32.totalorder %s9, 0
    %p113 = por %p111, %p112
    %p114 = scmp.ne.s32.totalorder %s103, %s106
    %p115 = scmp.eq.s32.totalorder %s14, 1
    %p116 = por %p114, %p115
    %p117 = scmp.ne.s32.totalorder %s106, %s107
    %p118 = scmp.eq.s32.totalorder %s14, 0
    %p119 = por %p117, %p118
    %p120 = scmp.ne.s32.totalorder %s106, %s107
    %p121 = scmp.eq.s32.totalorder %s15, 1
    %p122 = por %p120, %p121
    %p124 = scmp.ne.s32.totalorder %s107, %s123
    %p125 = scmp.eq.s32.totalorder %s15, 0
    %p126 = por %p124, %p125
    %p127 = scmp.le.s32.totalorder 1, %s9
    %p128 = scmp.lt.s32.totalorder %s9, 3
    %p129 = pnand %p127, %p128
    %p130 = pneg %p129
    // Predicated region
    $region9: #{tpu_custom_call.1} parent=5 // pred_check
      _
    $region10: #{tpu_custom_call.1} parent=5 // pred_check_branch
      %132 = sbr.rel (%p129) target = $region12
    $region11: #{tpu_custom_call.1} parent=5 // pred_region
      %s133 = ssub.s32 %s9, 1
      // Predicated region
      $region13: #{tpu_custom_call.1} parent=11 // pred_check
        %p134 = pneg %p70
      $region14: #{tpu_custom_call.1} parent=11 // pred_check_branch
        %136 = sbr.rel (%p134) target = $region16
      $region15: #{tpu_custom_call.1} parent=11 // pred_region
        _
      $region16: #{tpu_custom_call.1} parent=11 // pred_fallthru
        _
      // Predicated region
      $region17: #{tpu_custom_call.1} parent=11 // pred_check
        %p137 = pneg %p91
      $region18: #{tpu_custom_call.1} parent=11 // pred_check_branch
        %139 = sbr.rel (%p137) target = $region20
      $region19: #{tpu_custom_call.1} parent=11 // pred_region
        _
      $region20: #{tpu_custom_call.1} parent=11 // pred_fallthru
        _
    $region12: #{tpu_custom_call.1} parent=5 // pred_fallthru
      _
    %p140 = scmp.lt.s32.totalorder %s9, 2
    // Predicated region
    $region21: #{tpu_custom_call.1} parent=5 // pred_check
      %p141 = pneg %p140
    $region22: #{tpu_custom_call.1} parent=5 // pred_check_branch
      %143 = sbr.rel (%p141) target = $region24
    $region23: #{tpu_custom_call.1} parent=5 // pred_region
      // Predicated region
      $region25: #{tpu_custom_call.1} parent=23 // pred_check
        %p144 = pneg %p43
      $region26: #{tpu_custom_call.1} parent=23 // pred_check_branch
        %146 = sbr.rel (%p144) target = $region28
      $region27: #{tpu_custom_call.1} parent=23 // pred_region
        %p147 = scmp.lt.s32.totalorder %s16, 1
        %s148 = scalar_select %p147, %s16, 1
        %p149 = scmp.lt.s32.totalorder %s17, 0
        %s150 = scalar_select %p149, %s17, 0
        %s151 = smul.addr %s150, 72
        %s152 = smul.addr %s148, 72
        %s153 = sadd.s32 %s151, %s152
        %s154 = smul.addr %s153, 4
        %s155 = scalar_lea.vmem %s0, %s154
      $region28: #{tpu_custom_call.1} parent=23 // pred_fallthru
        _
    $region24: #{tpu_custom_call.1} parent=5 // pred_fallthru
      _
    %p156 = scmp.le.s32.totalorder 1, %s9
    %p157 = scmp.lt.s32.totalorder %s9, 3
    %p158 = pnand %p156, %p157
    %p159 = pneg %p158
    // Predicated region
    $region29: #{tpu_custom_call.1} parent=5 // pred_check
      _
    $region30: #{tpu_custom_call.1} parent=5 // pred_check_branch
      %161 = sbr.rel (%p158) target = $region32
    $region31: #{tpu_custom_call.1} parent=5 // pred_region
      %s162 = ssub.s32 %s9, 1
      %p163 = scmp.lt.s32.totalorder %s18, 1
      %s164 = scalar_select %p163, %s18, 1
      %p165 = scmp.lt.s32.totalorder %s19, 0
      %s166 = scalar_select %p165, %s19, 0
      %s167 = smul.addr %s166, 72
      %s168 = smul.addr %s164, 72
      %s169 = sadd.s32 %s167, %s168
      %s170 = smul.addr %s169, 4
      %s171 = scalar_lea.vmem %s0, %s170
      %p172 = pneg %p49
      %p173 = pneg %p46
      %p174 = pneg %p70
      %p175 = pneg %p67
      %p176 = pneg %p91
      %p177 = pneg %p88
      %p178 = pneg %p119
      %p179 = pneg %p116
      %s180 = smul.u32 8, %s19
      %p181 = scmp.lt.s32.totalorder %s18, 1
      %s182 = scalar_select %p181, %s18, 1
      %p183 = scmp.lt.s32.totalorder %s180, 7
      %s184 = scalar_select %p183, %s180, 7
      %s185 = smul.addr %s182, 8
      %s186 = sadd.s32 %s184, %s185
      %s187 = smul.addr %s186, 8
      %s188 = scalar_lea.vmem %s3, %s187
      %p189 = scmp.lt.s32.totalorder %s18, 1
      %s190 = scalar_select %p189, %s18, 1
      %p191 = scmp.lt.s32.totalorder %s19, 0
      %s192 = scalar_select %p191, %s19, 0
      %s193 = smul.addr %s192, 72
      %s194 = smul.addr %s190, 72
      %s195 = sadd.s32 %s193, %s194
      %s196 = smul.addr %s195, 4
      %s197 = scalar_lea.vmem %s0, %s196
      %s198 = smul.u32 8, %s19
      %p199 = scmp.lt.s32.totalorder %s18, 1
      %s200 = scalar_select %p199, %s18, 1
      %p201 = scmp.lt.s32.totalorder %s198, 7
      %s202 = scalar_select %p201, %s198, 7
      %s203 = smul.addr %s200, 8
      %s204 = sadd.s32 %s202, %s203
      %s205 = smul.addr %s204, 8
      %s206 = scalar_lea.vmem %s3, %s205
      %s207 = smul.u32 8, %s19
      %v209 = vld [vmem:[%s197] sm:$0xf]
      %v210 = vld [vmem:[%s197 + $0x8] sm:$0xf]
      %v211 = vld [vmem:[%s197 + $0x10] sm:$0xf]
      %v212 = vld [vmem:[%s197 + $0x18] sm:$0xf]
      %v213 = vld [vmem:[%s197 + $0x20] sm:$0xf]
      %v214 = vld [vmem:[%s197 + $0x28] sm:$0xf]
      %v215 = vld [vmem:[%s197 + $0x30] sm:$0xf]
      %v216 = vld [vmem:[%s197 + $0x38] sm:$0xf]
      %s217 = scalar_lea.vmem %s197, 72
      %v218 = vld [vmem:[%s217] sm:$0xf]
      %v219 = vld [vmem:[%s217 + $0x8] sm:$0xf]
      %v220 = vld [vmem:[%s217 + $0x10] sm:$0xf]
      %v221 = vld [vmem:[%s217 + $0x18] sm:$0xf]
      %v222 = vld [vmem:[%s217 + $0x20] sm:$0xf]
      %v223 = vld [vmem:[%s217 + $0x28] sm:$0xf]
      %v224 = vld [vmem:[%s217 + $0x30] sm:$0xf]
      %v225 = vld [vmem:[%s217 + $0x38] sm:$0xf]
      %v226 = vld [vmem:[%s197 + $0x4] sm:$0x1]
      %v227 = vld [vmem:[%s197 + $0xc] sm:$0x1]
      %v228 = vld [vmem:[%s197 + $0x14] sm:$0x1]
      %v229 = vld [vmem:[%s197 + $0x1c] sm:$0x1]
      %v230 = vld [vmem:[%s197 + $0x24] sm:$0x1]
      %v231 = vld [vmem:[%s197 + $0x2c] sm:$0x1]
      %v232 = vld [vmem:[%s197 + $0x34] sm:$0x1]
      %v233 = vld [vmem:[%s197 + $0x3c] sm:$0x1]
      %vm234 = vsmask.f32 3328
      %vm235 = vsmask.f32 7440
      %vm236 = vmor %vm234, %vm235
      %v238 = vshrl.u32 %v209, 16
      %v240 = vrot.slane %v238, 4
      %v241 = vshll.u32 %v209, 16
      %v243 = vrot.slane %v241, 5
      %v244 = vor.u32 %v240, %v243
      %v245 = vrot.slane %v244, 4
      %v247 = vshll.u32 %v226, 16
      %v249 = vrot.slane %v247, 5
      %v250 = vsel %vm236, %v245, %v249
      %v252 = vshrl.u32 %v210, 16
      %v254 = vrot.slane %v252, 4
      %v255 = vshll.u32 %v210, 16
      %v257 = vrot.slane %v255, 5
      %v258 = vor.u32 %v254, %v257
      %v259 = vrot.slane %v258, 4
      %v261 = vshll.u32 %v227, 16
      %v263 = vrot.slane %v261, 5
      %v264 = vsel %vm236, %v259, %v263
      %v266 = vshrl.u32 %v211, 16
      %v268 = vrot.slane %v266, 4
      %v269 = vshll.u32 %v211, 16
      %v271 = vrot.slane %v269, 5
      %v272 = vor.u32 %v268, %v271
      %v273 = vrot.slane %v272, 4
      %v275 = vshll.u32 %v228, 16
      %v277 = vrot.slane %v275, 5
      %v278 = vsel %vm236, %v273, %v277
      %v280 = vshrl.u32 %v212, 16
      %v282 = vrot.slane %v280, 4
      %v283 = vshll.u32 %v212, 16
      %v285 = vrot.slane %v283, 5
      %v286 = vor.u32 %v282, %v285
      %v287 = vrot.slane %v286, 4
      %v289 = vshll.u32 %v229, 16
      %v291 = vrot.slane %v289, 5
      %v292 = vsel %vm236, %v287, %v291
      %v294 = vshrl.u32 %v213, 16
      %v296 = vrot.slane %v294, 4
      %v297 = vshll.u32 %v213, 16
      %v299 = vrot.slane %v297, 5
      %v300 = vor.u32 %v296, %v299
      %v301 = vrot.slane %v300, 4
      %v303 = vshll.u32 %v230, 16
      %v305 = vrot.slane %v303, 5
      %v306 = vsel %vm236, %v301, %v305
      %v308 = vshrl.u32 %v214, 16
      %v310 = vrot.slane %v308, 4
      %v311 = vshll.u32 %v214, 16
      %v313 = vrot.slane %v311, 5
      %v314 = vor.u32 %v310, %v313
      %v315 = vrot.slane %v314, 4
      %v317 = vshll.u32 %v231, 16
      %v319 = vrot.slane %v317, 5
      %v320 = vsel %vm236, %v315, %v319
      %v322 = vshrl.u32 %v215, 16
      %v324 = vrot.slane %v322, 4
      %v325 = vshll.u32 %v215, 16
      %v327 = vrot.slane %v325, 5
      %v328 = vor.u32 %v324, %v327
      %v329 = vrot.slane %v328, 4
      %v331 = vshll.u32 %v232, 16
      %v333 = vrot.slane %v331, 5
      %v334 = vsel %vm236, %v329, %v333
      %v336 = vshrl.u32 %v216, 16
      %v338 = vrot.slane %v336, 4
      %v339 = vshll.u32 %v216, 16
      %v341 = vrot.slane %v339, 5
      %v342 = vor.u32 %v338, %v341
      %v343 = vrot.slane %v342, 4
      %v345 = vshll.u32 %v233, 16
      %v347 = vrot.slane %v345, 5
      %v348 = vsel %vm236, %v343, %v347
      %v349 = vld [vmem:[%s217 + $0x4] sm:$0x1]
      %v350 = vld [vmem:[%s217 + $0xc] sm:$0x1]
      %v351 = vld [vmem:[%s217 + $0x14] sm:$0x1]
      %v352 = vld [vmem:[%s217 + $0x1c] sm:$0x1]
      %v353 = vld [vmem:[%s217 + $0x24] sm:$0x1]
      %v354 = vld [vmem:[%s217 + $0x2c] sm:$0x1]
      %v355 = vld [vmem:[%s217 + $0x34] sm:$0x1]
      %v356 = vld [vmem:[%s217 + $0x3c] sm:$0x1]
      %v358 = vshrl.u32 %v218, 16
      %v360 = vrot.slane %v358, 4
      %v361 = vshll.u32 %v218, 16
      %v363 = vrot.slane %v361, 5
      %v364 = vor.u32 %v360, %v363
      %v365 = vrot.slane %v364, 4
      %v367 = vshll.u32 %v349, 16
      %v369 = vrot.slane %v367, 5
      %v370 = vsel %vm236, %v365, %v369
      %v372 = vshrl.u32 %v219, 16
      %v374 = vrot.slane %v372, 4
      %v375 = vshll.u32 %v219, 16
      %v377 = vrot.slane %v375, 5
      %v378 = vor.u32 %v374, %v377
      %v379 = vrot.slane %v378, 4
      %v381 = vshll.u32 %v350, 16
      %v383 = vrot.slane %v381, 5
      %v384 = vsel %vm236, %v379, %v383
      %v386 = vshrl.u32 %v220, 16
      %v388 = vrot.slane %v386, 4
      %v389 = vshll.u32 %v220, 16
      %v391 = vrot.slane %v389, 5
      %v392 = vor.u32 %v388, %v391
      %v393 = vrot.slane %v392, 4
      %v395 = vshll.u32 %v351, 16
      %v397 = vrot.slane %v395, 5
      %v398 = vsel %vm236, %v393, %v397
      %v400 = vshrl.u32 %v221, 16
      %v402 = vrot.slane %v400, 4
      %v403 = vshll.u32 %v221, 16
      %v405 = vrot.slane %v403, 5
      %v406 = vor.u32 %v402, %v405
      %v407 = vrot.slane %v406, 4
      %v409 = vshll.u32 %v352, 16
      %v411 = vrot.slane %v409, 5
      %v412 = vsel %vm236, %v407, %v411
      %v414 = vshrl.u32 %v222, 16
      %v416 = vrot.slane %v414, 4
      %v417 = vshll.u32 %v222, 16
      %v419 = vrot.slane %v417, 5
      %v420 = vor.u32 %v416, %v419
      %v421 = vrot.slane %v420, 4
      %v423 = vshll.u32 %v353, 16
      %v425 = vrot.slane %v423, 5
      %v426 = vsel %vm236, %v421, %v425
      %v428 = vshrl.u32 %v223, 16
      %v430 = vrot.slane %v428, 4
      %v431 = vshll.u32 %v223, 16
      %v433 = vrot.slane %v431, 5
      %v434 = vor.u32 %v430, %v433
      %v435 = vrot.slane %v434, 4
      %v437 = vshll.u32 %v354, 16
      %v439 = vrot.slane %v437, 5
      %v440 = vsel %vm236, %v435, %v439
      %v442 = vshrl.u32 %v224, 16
      %v444 = vrot.slane %v442, 4
      %v445 = vshll.u32 %v224, 16
      %v447 = vrot.slane %v445, 5
      %v448 = vor.u32 %v444, %v447
      %v449 = vrot.slane %v448, 4
      %v451 = vshll.u32 %v355, 16
      %v453 = vrot.slane %v451, 5
      %v454 = vsel %vm236, %v449, %v453
      %v456 = vshrl.u32 %v225, 16
      %v458 = vrot.slane %v456, 4
      %v459 = vshll.u32 %v225, 16
      %v461 = vrot.slane %v459, 5
      %v462 = vor.u32 %v458, %v461
      %v463 = vrot.slane %v462, 4
      %v465 = vshll.u32 %v356, 16
      %v467 = vrot.slane %v465, 5
      %v468 = vsel %vm236, %v463, %v467
      %v477 = vunpack.c.l.b16 %v209
      %v478 = vunpack.c.l.b16 %v210
      %v479 = vunpack.c.l.b16 %v211
      %v480 = vunpack.c.l.b16 %v212
      %v481 = vunpack.c.l.b16 %v213
      %v482 = vunpack.c.l.b16 %v214
      %v483 = vunpack.c.l.b16 %v215
      %v484 = vunpack.c.l.b16 %v216
      %v485 = vpack.c.b16 %v478, %v477
      %v486 = vpack.c.b16 %v480, %v479
      %v487 = vpack.c.b16 %v482, %v481
      %v488 = vpack.c.b16 %v484, %v483
      %v497 = vunpack.c.l.b16 %v218
      %v498 = vunpack.c.l.b16 %v219
      %v499 = vunpack.c.l.b16 %v220
      %v500 = vunpack.c.l.b16 %v221
      %v501 = vunpack.c.l.b16 %v222
      %v502 = vunpack.c.l.b16 %v223
      %v503 = vunpack.c.l.b16 %v224
      %v504 = vunpack.c.l.b16 %v225
      %v505 = vpack.c.b16 %v498, %v497
      %v506 = vpack.c.b16 %v500, %v499
      %v507 = vpack.c.b16 %v502, %v501
      %v508 = vpack.c.b16 %v504, %v503
      %509 = vrot.lane.b32.xlu0 %v505, 4
      %v510 = vpop.permute.xlu0 %509
      %511 = vrot.lane.b32.xlu0 %v506, 4
      %v512 = vpop.permute.xlu0 %511
      %513 = vrot.lane.b32.xlu0 %v507, 4
      %v514 = vpop.permute.xlu0 %513
      %515 = vrot.lane.b32.xlu0 %v508, 4
      %v516 = vpop.permute.xlu0 %515
      %v517 = vunpack.c.l.b16 %v250
      %v518 = vunpack.c.l.b16 %v264
      %v519 = vunpack.c.l.b16 %v278
      %v520 = vunpack.c.l.b16 %v292
      %v521 = vunpack.c.l.b16 %v306
      %v522 = vunpack.c.l.b16 %v320
      %v523 = vunpack.c.l.b16 %v334
      %v524 = vunpack.c.l.b16 %v348
      %v525 = vpack.c.b16 %v518, %v517
      %v526 = vpack.c.b16 %v520, %v519
      %v527 = vpack.c.b16 %v522, %v521
      %v528 = vpack.c.b16 %v524, %v523
      %529 = vrot.lane.b32.xlu0 %v525, 8
      %v530 = vpop.permute.xlu0 %529
      %531 = vrot.lane.b32.xlu0 %v526, 8
      %v532 = vpop.permute.xlu0 %531
      %533 = vrot.lane.b32.xlu0 %v527, 8
      %v534 = vpop.permute.xlu0 %533
      %535 = vrot.lane.b32.xlu0 %v528, 8
      %v536 = vpop.permute.xlu0 %535
      %v537 = vunpack.c.l.b16 %v370
      %v538 = vunpack.c.l.b16 %v384
      %v539 = vunpack.c.l.b16 %v398
      %v540 = vunpack.c.l.b16 %v412
      %v541 = vunpack.c.l.b16 %v426
      %v542 = vunpack.c.l.b16 %v440
      %v543 = vunpack.c.l.b16 %v454
      %v544 = vunpack.c.l.b16 %v468
      %v545 = vpack.c.b16 %v538, %v537
      %v546 = vpack.c.b16 %v540, %v539
      %v547 = vpack.c.b16 %v542, %v541
      %v548 = vpack.c.b16 %v544, %v543
      %549 = vrot.lane.b32.xlu0 %v545, 12
      %v550 = vpop.permute.xlu0 %549
      %551 = vrot.lane.b32.xlu0 %v546, 12
      %v552 = vpop.permute.xlu0 %551
      %553 = vrot.lane.b32.xlu0 %v547, 12
      %v554 = vpop.permute.xlu0 %553
      %555 = vrot.lane.b32.xlu0 %v548, 12
      %v556 = vpop.permute.xlu0 %555
      %vm557 = vcmask 31744
      %v560 = vsel %vm557, %v485, %v510
      %v563 = vsel %vm557, %v486, %v512
      %v566 = vsel %vm557, %v487, %v514
      %v569 = vsel %vm557, %v488, %v516
      %vm570 = vcmask 64512
      %v572 = vsel %vm570, %v560, %v530
      %v574 = vsel %vm570, %v563, %v532
      %v576 = vsel %vm570, %v566, %v534
      %v578 = vsel %vm570, %v569, %v536
      %vm579 = vcmask 97280
      %v581 = vsel %vm579, %v572, %v550
      %v583 = vsel %vm579, %v574, %v552
      %v585 = vsel %vm579, %v576, %v554
      %v587 = vsel %vm579, %v578, %v556
      %v588 = vld [vmem:[%s1] sm:$0xf]
      %v589 = vld [vmem:[%s1 + $0x4] sm:$0xf]
      %s590 = scalar_lea.vmem %s197, 144
      %v591 = vld [vmem:[%s590] sm:$0xf]
      %v592 = vld [vmem:[%s590 + $0x8] sm:$0xf]
      %v593 = vld [vmem:[%s590 + $0x10] sm:$0xf]
      %v594 = vld [vmem:[%s590 + $0x18] sm:$0xf]
      %v595 = vld [vmem:[%s590 + $0x20] sm:$0xf]
      %v596 = vld [vmem:[%s590 + $0x28] sm:$0xf]
      %v597 = vld [vmem:[%s590 + $0x30] sm:$0xf]
      %v598 = vld [vmem:[%s590 + $0x38] sm:$0xf]
      %s599 = scalar_lea.vmem %s197, 216
      %v600 = vld [vmem:[%s599] sm:$0xf]
      %v601 = vld [vmem:[%s599 + $0x8] sm:$0xf]
      %v602 = vld [vmem:[%s599 + $0x10] sm:$0xf]
      %v603 = vld [vmem:[%s599 + $0x18] sm:$0xf]
      %v604 = vld [vmem:[%s599 + $0x20] sm:$0xf]
      %v605 = vld [vmem:[%s599 + $0x28] sm:$0xf]
      %v606 = vld [vmem:[%s599 + $0x30] sm:$0xf]
      %v607 = vld [vmem:[%s599 + $0x38] sm:$0xf]
      %v608 = vld [vmem:[%s590 + $0x4] sm:$0x1]
      %v609 = vld [vmem:[%s590 + $0xc] sm:$0x1]
      %v610 = vld [vmem:[%s590 + $0x14] sm:$0x1]
      %v611 = vld [vmem:[%s590 + $0x1c] sm:$0x1]
      %v612 = vld [vmem:[%s590 + $0x24] sm:$0x1]
      %v613 = vld [vmem:[%s590 + $0x2c] sm:$0x1]
      %v614 = vld [vmem:[%s590 + $0x34] sm:$0x1]
      %v615 = vld [vmem:[%s590 + $0x3c] sm:$0x1]
      %v617 = vshrl.u32 %v591, 16
      %v619 = vrot.slane %v617, 4
      %v620 = vshll.u32 %v591, 16
      %v622 = vrot.slane %v620, 5
      %v623 = vor.u32 %v619, %v622
      %v624 = vrot.slane %v623, 4
      %v626 = vshll.u32 %v608, 16
      %v628 = vrot.slane %v626, 5
      %v629 = vsel %vm236, %v624, %v628
      %v631 = vshrl.u32 %v592, 16
      %v633 = vrot.slane %v631, 4
      %v634 = vshll.u32 %v592, 16
      %v636 = vrot.slane %v634, 5
      %v637 = vor.u32 %v633, %v636
      %v638 = vrot.slane %v637, 4
      %v640 = vshll.u32 %v609, 16
      %v642 = vrot.slane %v640, 5
      %v643 = vsel %vm236, %v638, %v642
      %v645 = vshrl.u32 %v593, 16
      %v647 = vrot.slane %v645, 4
      %v648 = vshll.u32 %v593, 16
      %v650 = vrot.slane %v648, 5
      %v651 = vor.u32 %v647, %v650
      %v652 = vrot.slane %v651, 4
      %v654 = vshll.u32 %v610, 16
      %v656 = vrot.slane %v654, 5
      %v657 = vsel %vm236, %v652, %v656
      %v659 = vshrl.u32 %v594, 16
      %v661 = vrot.slane %v659, 4
      %v662 = vshll.u32 %v594, 16
      %v664 = vrot.slane %v662, 5
      %v665 = vor.u32 %v661, %v664
      %v666 = vrot.slane %v665, 4
      %v668 = vshll.u32 %v611, 16
      %v670 = vrot.slane %v668, 5
      %v671 = vsel %vm236, %v666, %v670
      %v673 = vshrl.u32 %v595, 16
      %v675 = vrot.slane %v673, 4
      %v676 = vshll.u32 %v595, 16
      %v678 = vrot.slane %v676, 5
      %v679 = vor.u32 %v675, %v678
      %v680 = vrot.slane %v679, 4
      %v682 = vshll.u32 %v612, 16
      %v684 = vrot.slane %v682, 5
      %v685 = vsel %vm236, %v680, %v684
      %v687 = vshrl.u32 %v596, 16
      %v689 = vrot.slane %v687, 4
      %v690 = vshll.u32 %v596, 16
      %v692 = vrot.slane %v690, 5
      %v693 = vor.u32 %v689, %v692
      %v694 = vrot.slane %v693, 4
      %v696 = vshll.u32 %v613, 16
      %v698 = vrot.slane %v696, 5
      %v699 = vsel %vm236, %v694, %v698
      %v701 = vshrl.u32 %v597, 16
      %v703 = vrot.slane %v701, 4
      %v704 = vshll.u32 %v597, 16
      %v706 = vrot.slane %v704, 5
      %v707 = vor.u32 %v703, %v706
      %v708 = vrot.slane %v707, 4
      %v710 = vshll.u32 %v614, 16
      %v712 = vrot.slane %v710, 5
      %v713 = vsel %vm236, %v708, %v712
      %v715 = vshrl.u32 %v598, 16
      %v717 = vrot.slane %v715, 4
      %v718 = vshll.u32 %v598, 16
      %v720 = vrot.slane %v718, 5
      %v721 = vor.u32 %v717, %v720
      %v722 = vrot.slane %v721, 4
      %v724 = vshll.u32 %v615, 16
      %v726 = vrot.slane %v724, 5
      %v727 = vsel %vm236, %v722, %v726
      %v728 = vld [vmem:[%s599 + $0x4] sm:$0x1]
      %v729 = vld [vmem:[%s599 + $0xc] sm:$0x1]
      %v730 = vld [vmem:[%s599 + $0x14] sm:$0x1]
      %v731 = vld [vmem:[%s599 + $0x1c] sm:$0x1]
      %v732 = vld [vmem:[%s599 + $0x24] sm:$0x1]
      %v733 = vld [vmem:[%s599 + $0x2c] sm:$0x1]
      %v734 = vld [vmem:[%s599 + $0x34] sm:$0x1]
      %v735 = vld [vmem:[%s599 + $0x3c] sm:$0x1]
      %v737 = vshrl.u32 %v600, 16
      %v739 = vrot.slane %v737, 4
      %v740 = vshll.u32 %v600, 16
      %v742 = vrot.slane %v740, 5
      %v743 = vor.u32 %v739, %v742
      %v744 = vrot.slane %v743, 4
      %v746 = vshll.u32 %v728, 16
      %v748 = vrot.slane %v746, 5
      %v749 = vsel %vm236, %v744, %v748
      %v751 = vshrl.u32 %v601, 16
      %v753 = vrot.slane %v751, 4
      %v754 = vshll.u32 %v601, 16
      %v756 = vrot.slane %v754, 5
      %v757 = vor.u32 %v753, %v756
      %v758 = vrot.slane %v757, 4
      %v760 = vshll.u32 %v729, 16
      %v762 = vrot.slane %v760, 5
      %v763 = vsel %vm236, %v758, %v762
      %v765 = vshrl.u32 %v602, 16
      %v767 = vrot.slane %v765, 4
      %v768 = vshll.u32 %v602, 16
      %v770 = vrot.slane %v768, 5
      %v771 = vor.u32 %v767, %v770
      %v772 = vrot.slane %v771, 4
      %v774 = vshll.u32 %v730, 16
      %v776 = vrot.slane %v774, 5
      %v777 = vsel %vm236, %v772, %v776
      %v779 = vshrl.u32 %v603, 16
      %v781 = vrot.slane %v779, 4
      %v782 = vshll.u32 %v603, 16
      %v784 = vrot.slane %v782, 5
      %v785 = vor.u32 %v781, %v784
      %v786 = vrot.slane %v785, 4
      %v788 = vshll.u32 %v731, 16
      %v790 = vrot.slane %v788, 5
      %v791 = vsel %vm236, %v786, %v790
      %v793 = vshrl.u32 %v604, 16
      %v795 = vrot.slane %v793, 4
      %v796 = vshll.u32 %v604, 16
      %v798 = vrot.slane %v796, 5
      %v799 = vor.u32 %v795, %v798
      %v800 = vrot.slane %v799, 4
      %v802 = vshll.u32 %v732, 16
      %v804 = vrot.slane %v802, 5
      %v805 = vsel %vm236, %v800, %v804
      %v807 = vshrl.u32 %v605, 16
      %v809 = vrot.slane %v807, 4
      %v810 = vshll.u32 %v605, 16
      %v812 = vrot.slane %v810, 5
      %v813 = vor.u32 %v809, %v812
      %v814 = vrot.slane %v813, 4
      %v816 = vshll.u32 %v733, 16
      %v818 = vrot.slane %v816, 5
      %v819 = vsel %vm236, %v814, %v818
      %v821 = vshrl.u32 %v606, 16
      %v823 = vrot.slane %v821, 4
      %v824 = vshll.u32 %v606, 16
      %v826 = vrot.slane %v824, 5
      %v827 = vor.u32 %v823, %v826
      %v828 = vrot.slane %v827, 4
      %v830 = vshll.u32 %v734, 16
      %v832 = vrot.slane %v830, 5
      %v833 = vsel %vm236, %v828, %v832
      %v835 = vshrl.u32 %v607, 16
      %v837 = vrot.slane %v835, 4
      %v838 = vshll.u32 %v607, 16
      %v840 = vrot.slane %v838, 5
      %v841 = vor.u32 %v837, %v840
      %v842 = vrot.slane %v841, 4
      %v844 = vshll.u32 %v735, 16
      %v846 = vrot.slane %v844, 5
      %v847 = vsel %vm236, %v842, %v846
      %v856 = vunpack.c.l.b16 %v591
      %v857 = vunpack.c.l.b16 %v592
      %v858 = vunpack.c.l.b16 %v593
      %v859 = vunpack.c.l.b16 %v594
      %v860 = vunpack.c.l.b16 %v595
      %v861 = vunpack.c.l.b16 %v596
      %v862 = vunpack.c.l.b16 %v597
      %v863 = vunpack.c.l.b16 %v598
      %v864 = vpack.c.b16 %v857, %v856
      %v865 = vpack.c.b16 %v859, %v858
      %v866 = vpack.c.b16 %v861, %v860
      %v867 = vpack.c.b16 %v863, %v862
      %v876 = vunpack.c.l.b16 %v600
      %v877 = vunpack.c.l.b16 %v601
      %v878 = vunpack.c.l.b16 %v602
      %v879 = vunpack.c.l.b16 %v603
      %v880 = vunpack.c.l.b16 %v604
      %v881 = vunpack.c.l.b16 %v605
      %v882 = vunpack.c.l.b16 %v606
      %v883 = vunpack.c.l.b16 %v607
      %v884 = vpack.c.b16 %v877, %v876
      %v885 = vpack.c.b16 %v879, %v878
      %v886 = vpack.c.b16 %v881, %v880
      %v887 = vpack.c.b16 %v883, %v882
      %888 = vrot.lane.b32.xlu0 %v884, 4
      %v889 = vpop.permute.xlu0 %888
      %890 = vrot.lane.b32.xlu0 %v885, 4
      %v891 = vpop.permute.xlu0 %890
      %892 = vrot.lane.b32.xlu0 %v886, 4
      %v893 = vpop.permute.xlu0 %892
      %894 = vrot.lane.b32.xlu0 %v887, 4
      %v895 = vpop.permute.xlu0 %894
      %v896 = vunpack.c.l.b16 %v629
      %v897 = vunpack.c.l.b16 %v643
      %v898 = vunpack.c.l.b16 %v657
      %v899 = vunpack.c.l.b16 %v671
      %v900 = vunpack.c.l.b16 %v685
      %v901 = vunpack.c.l.b16 %v699
      %v902 = vunpack.c.l.b16 %v713
      %v903 = vunpack.c.l.b16 %v727
      %v904 = vpack.c.b16 %v897, %v896
      %v905 = vpack.c.b16 %v899, %v898
      %v906 = vpack.c.b16 %v901, %v900
      %v907 = vpack.c.b16 %v903, %v902
      %908 = vrot.lane.b32.xlu0 %v904, 8
      %v909 = vpop.permute.xlu0 %908
      %910 = vrot.lane.b32.xlu0 %v905, 8
      %v911 = vpop.permute.xlu0 %910
      %912 = vrot.lane.b32.xlu0 %v906, 8
      %v913 = vpop.permute.xlu0 %912
      %914 = vrot.lane.b32.xlu0 %v907, 8
      %v915 = vpop.permute.xlu0 %914
      %v916 = vunpack.c.l.b16 %v749
      %v917 = vunpack.c.l.b16 %v763
      %v918 = vunpack.c.l.b16 %v777
      %v919 = vunpack.c.l.b16 %v791
      %v920 = vunpack.c.l.b16 %v805
      %v921 = vunpack.c.l.b16 %v819
      %v922 = vunpack.c.l.b16 %v833
      %v923 = vunpack.c.l.b16 %v847
      %v924 = vpack.c.b16 %v917, %v916
      %v925 = vpack.c.b16 %v919, %v918
      %v926 = vpack.c.b16 %v921, %v920
      %v927 = vpack.c.b16 %v923, %v922
      %928 = vrot.lane.b32.xlu0 %v924, 12
      %v929 = vpop.permute.xlu0 %928
      %930 = vrot.lane.b32.xlu0 %v925, 12
      %v931 = vpop.permute.xlu0 %930
      %932 = vrot.lane.b32.xlu0 %v926, 12
      %v933 = vpop.permute.xlu0 %932
      %934 = vrot.lane.b32.xlu0 %v927, 12
      %v935 = vpop.permute.xlu0 %934
      %v938 = vsel %vm557, %v864, %v889
      %v941 = vsel %vm557, %v865, %v891
      %v944 = vsel %vm557, %v866, %v893
      %v947 = vsel %vm557, %v867, %v895
      %v949 = vsel %vm570, %v938, %v909
      %v951 = vsel %vm570, %v941, %v911
      %v953 = vsel %vm570, %v944, %v913
      %v955 = vsel %vm570, %v947, %v915
      %v957 = vsel %vm579, %v949, %v929
      %v959 = vsel %vm579, %v951, %v931
      %v961 = vsel %vm579, %v953, %v933
      %v963 = vsel %vm579, %v955, %v935
      %v964 = vld [vmem:[%s1 + $0x8] sm:$0xf]
      %v965 = vld [vmem:[%s1 + $0xc] sm:$0xf]
      %v968 = vunpack.c.l.b16 %v964
      %v969 = vunpack.c.l.b16 %v965
      %v970 = vpack.c.b16 %v969, %v968
      %vm972 = vcmask 130048
      %v973 = vsel %vm972, %v957, 0
      %v975 = vsel %vm972, %v959, 0
      %v977 = vsel %vm972, %v961, 0
      %v979 = vsel %vm972, %v963, 0
      %981 = vmatprep.subr.bf16.mxu0 0
      %982 = vmatpush1.bf16.msra.mxu0 %v970
      %983 = vmatprep.subr.bf16.mxu0 0
      %984 = vmatpush1.bf16.msra.mxu0 0
      %985 = vmatprep.subr.bf16.mxu0 0
      %986 = vmatpush1.bf16.msra.mxu0 0
      %987 = vmatprep.subr.bf16.mxu0 0
      %988 = vmatpush1.bf16.msra.mxu0 0
      %989 = vmatprep.subr.bf16.mxu0 0
      %990 = vmatpush1.bf16.msra.mxu0 0
      %991 = vmatprep.subr.bf16.mxu0 0
      %992 = vmatpush1.bf16.msra.mxu0 0
      %993 = vmatprep.subr.bf16.mxu0 0
      %994 = vmatpush1.bf16.msra.mxu0 0
      %995 = vmatprep.subr.bf16.mxu0 0
      %996 = vmatpush1.bf16.msra.mxu0 0
      %997 = vmatprep.subr.bf16.mxu0 0
      %998 = vmatpush1.bf16.msra.mxu0 0
      %999 = vmatprep.subr.bf16.mxu0 0
      %1000 = vmatpush1.bf16.msra.mxu0 0
      %1001 = vmatprep.subr.bf16.mxu0 0
      %1002 = vmatpush1.bf16.msra.mxu0 0
      %1003 = vmatprep.subr.bf16.mxu0 0
      %1004 = vmatpush1.bf16.msra.mxu0 0
      %1005 = vmatprep.subr.bf16.mxu0 0
      %1006 = vmatpush1.bf16.msra.mxu0 0
      %1007 = vmatprep.subr.bf16.mxu0 0
      %1008 = vmatpush1.bf16.msra.mxu0 0
      %1009 = vmatprep.subr.bf16.mxu0 0
      %1010 = vmatpush1.bf16.msra.mxu0 0
      %1011 = vmatprep.subr.bf16.mxu0 0
      %1012 = vmatpush1.bf16.msra.mxu0 0
      %1013 = vmatprep.mubr.bf16.mxu0 0
      %1014 = vmatmul.mubr.bf16.gmra.mrb[0].mxu0 %v973
      %v1015 = vpop.f32.mrb[0].mxu0
      %v1016 = vadd.f32 0.0, %v1015
      %v1017 = vpop.f32.mrb[0].mxu0
      %v1018 = vpop.f32.mrb[0].mxu0
      %v1019 = vadd.f32 0.0, %v1018
      %v1020 = vpop.f32.mrb[0].mxu0
      %1021 = vmatprep.mubr.bf16.mxu0 0
      %1022 = vmatmul.mubr.bf16.gmra.mrb[0].mxu0 %v975
      %v1023 = vpop.f32.mrb[0].mxu0
      %v1024 = vadd.f32 0.0, %v1023
      %v1025 = vpop.f32.mrb[0].mxu0
      %v1026 = vpop.f32.mrb[0].mxu0
      %v1027 = vadd.f32 0.0, %v1026
      %v1028 = vpop.f32.mrb[0].mxu0
      %1029 = vmatprep.mubr.bf16.mxu0 0
      %1030 = vmatmul.mubr.bf16.gmra.mrb[0].mxu0 %v977
      %v1031 = vpop.f32.mrb[0].mxu0
      %v1032 = vadd.f32 0.0, %v1031
      %v1033 = vpop.f32.mrb[0].mxu0
      %v1034 = vpop.f32.mrb[0].mxu0
      %v1035 = vadd.f32 0.0, %v1034
      %v1036 = vpop.f32.mrb[0].mxu0
      %1037 = vmatprep.mubr.bf16.mxu0 0
      %1038 = vmatmul.mubr.bf16.gmra.mrb[0].mxu0 %v979
      %v1039 = vpop.f32.mrb[0].mxu0
      %v1040 = vadd.f32 0.0, %v1039
      %v1041 = vpop.f32.mrb[0].mxu0
      %v1042 = vpop.f32.mrb[0].mxu0
      %v1043 = vadd.f32 0.0, %v1042
      %v1044 = vpop.f32.mrb[0].mxu0
      %1045 = vdwg.mxu0
      %v1048 = vunpack.c.l.b16 %v588
      %v1049 = vunpack.c.l.b16 %v589
      %v1050 = vpack.c.b16 %v1049, %v1048
      %v1052 = vsel %vm972, %v581, 0
      %v1054 = vsel %vm972, %v583, 0
      %v1056 = vsel %vm972, %v585, 0
      %v1058 = vsel %vm972, %v587, 0
      %1060 = vmatprep.subr.bf16.mxu0 0
      %1061 = vmatpush1.bf16.msra.mxu0 %v1050
      %1062 = vmatprep.subr.bf16.mxu0 0
      %1063 = vmatpush1.bf16.msra.mxu0 0
      %1064 = vmatprep.subr.bf16.mxu0 0
      %1065 = vmatpush1.bf16.msra.mxu0 0
      %1066 = vmatprep.subr.bf16.mxu0 0
      %1067 = vmatpush1.bf16.msra.mxu0 0
      %1068 = vmatprep.subr.bf16.mxu0 0
      %1069 = vmatpush1.bf16.msra.mxu0 0
      %1070 = vmatprep.subr.bf16.mxu0 0
      %1071 = vmatpush1.bf16.msra.mxu0 0
      %1072 = vmatprep.subr.bf16.mxu0 0
      %1073 = vmatpush1.bf16.msra.mxu0 0
      %1074 = vmatprep.subr.bf16.mxu0 0
      %1075 = vmatpush1.bf16.msra.mxu0 0
      %1076 = vmatprep.subr.bf16.mxu0 0
      %1077 = vmatpush1.bf16.msra.mxu0 0
      %1078 = vmatprep.subr.bf16.mxu0 0
      %1079 = vmatpush1.bf16.msra.mxu0 0
      %1080 = vmatprep.subr.bf16.mxu0 0
      %1081 = vmatpush1.bf16.msra.mxu0 0
      %1082 = vmatprep.subr.bf16.mxu0 0
      %1083 = vmatpush1.bf16.msra.mxu0 0
      %1084 = vmatprep.subr.bf16.mxu0 0
      %1085 = vmatpush1.bf16.msra.mxu0 0
      %1086 = vmatprep.subr.bf16.mxu0 0
      %1087 = vmatpush1.bf16.msra.mxu0 0
      %1088 = vmatprep.subr.bf16.mxu0 0
      %1089 = vmatpush1.bf16.msra.mxu0 0
      %1090 = vmatprep.subr.bf16.mxu0 0
      %1091 = vmatpush1.bf16.msra.mxu0 0
      %1092 = vmatprep.mubr.bf16.mxu0 0
      %1093 = vmatmul.mubr.bf16.gmra.mrb[0].mxu0 %v1052
      %v1094 = vpop.f32.mrb[0].mxu0
      %v1095 = vadd.f32 %v1016, %v1094
      %v1096 = vpop.f32.mrb[0].mxu0
      %v1097 = vpop.f32.mrb[0].mxu0
      %v1098 = vadd.f32 %v1019, %v1097
      %v1099 = vpop.f32.mrb[0].mxu0
      %1100 = vmatprep.mubr.bf16.mxu0 0
      %1101 = vmatmul.mubr.bf16.gmra.mrb[0].mxu0 %v1054
      %v1102 = vpop.f32.mrb[0].mxu0
      %v1103 = vadd.f32 %v1024, %v1102
      %v1104 = vpop.f32.mrb[0].mxu0
      %v1105 = vpop.f32.mrb[0].mxu0
      %v1106 = vadd.f32 %v1027, %v1105
      %v1107 = vpop.f32.mrb[0].mxu0
      %1108 = vmatprep.mubr.bf16.mxu0 0
      %1109 = vmatmul.mubr.bf16.gmra.mrb[0].mxu0 %v1056
      %v1110 = vpop.f32.mrb[0].mxu0
      %v1111 = vadd.f32 %v1032, %v1110
      %v1112 = vpop.f32.mrb[0].mxu0
      %v1113 = vpop.f32.mrb[0].mxu0
      %v1114 = vadd.f32 %v1035, %v1113
      %v1115 = vpop.f32.mrb[0].mxu0
      %1116 = vmatprep.mubr.bf16.mxu0 0
      %1117 = vmatmul.mubr.bf16.gmra.mrb[0].mxu0 %v1058
      %v1118 = vpop.f32.mrb[0].mxu0
      %v1119 = vadd.f32 %v1040, %v1118
      %v1120 = vpop.f32.mrb[0].mxu0
      %v1121 = vpop.f32.mrb[0].mxu0
      %v1122 = vadd.f32 %v1043, %v1121
      %v1123 = vpop.f32.mrb[0].mxu0
      %1124 = vdwg.mxu0
      %s1125 = scalar_lea.vmem %s197, 8
      %v1126 = vld [vmem:[%s1125] sm:$0xf]
      %v1127 = vld [vmem:[%s1125 + $0x8] sm:$0xf]
      %v1128 = vld [vmem:[%s1125 + $0x10] sm:$0xf]
      %v1129 = vld [vmem:[%s1125 + $0x18] sm:$0xf]
      %v1130 = vld [vmem:[%s1125 + $0x20] sm:$0xf]
      %v1131 = vld [vmem:[%s1125 + $0x28] sm:$0xf]
      %v1132 = vld [vmem:[%s1125 + $0x30] sm:$0xf]
      %v1133 = vld [vmem:[%s1125 + $0x38] sm:$0xf]
      %s1134 = scalar_lea.vmem %s197, 80
      %v1135 = vld [vmem:[%s1134] sm:$0xf]
      %v1136 = vld [vmem:[%s1134 + $0x8] sm:$0xf]
      %v1137 = vld [vmem:[%s1134 + $0x10] sm:$0xf]
      %v1138 = vld [vmem:[%s1134 + $0x18] sm:$0xf]
      %v1139 = vld [vmem:[%s1134 + $0x20] sm:$0xf]
      %v1140 = vld [vmem:[%s1134 + $0x28] sm:$0xf]
      %v1141 = vld [vmem:[%s1134 + $0x30] sm:$0xf]
      %v1142 = vld [vmem:[%s1134 + $0x38] sm:$0xf]
      %v1143 = vld [vmem:[%s1125 + $0x4] sm:$0x1]
      %v1144 = vld [vmem:[%s1125 + $0xc] sm:$0x1]
      %v1145 = vld [vmem:[%s1125 + $0x14] sm:$0x1]
      %v1146 = vld [vmem:[%s1125 + $0x1c] sm:$0x1]
      %v1147 = vld [vmem:[%s1125 + $0x24] sm:$0x1]
      %v1148 = vld [vmem:[%s1125 + $0x2c] sm:$0x1]
      %v1149 = vld [vmem:[%s1125 + $0x34] sm:$0x1]
      %v1150 = vld [vmem:[%s1125 + $0x3c] sm:$0x1]
      %v1152 = vshrl.u32 %v1126, 16
      %v1154 = vrot.slane %v1152, 4
      %v1155 = vshll.u32 %v1126, 16
      %v1157 = vrot.slane %v1155, 5
      %v1158 = vor.u32 %v1154, %v1157
      %v1159 = vrot.slane %v1158, 4
      %v1161 = vshll.u32 %v1143, 16
      %v1163 = vrot.slane %v1161, 5
      %v1164 = vsel %vm236, %v1159, %v1163
      %v1166 = vshrl.u32 %v1127, 16
      %v1168 = vrot.slane %v1166, 4
      %v1169 = vshll.u32 %v1127, 16
      %v1171 = vrot.slane %v1169, 5
      %v1172 = vor.u32 %v1168, %v1171
      %v1173 = vrot.slane %v1172, 4
      %v1175 = vshll.u32 %v1144, 16
      %v1177 = vrot.slane %v1175, 5
      %v1178 = vsel %vm236, %v1173, %v1177
      %v1180 = vshrl.u32 %v1128, 16
      %v1182 = vrot.slane %v1180, 4
      %v1183 = vshll.u32 %v1128, 16
      %v1185 = vrot.slane %v1183, 5
      %v1186 = vor.u32 %v1182, %v1185
      %v1187 = vrot.slane %v1186, 4
      %v1189 = vshll.u32 %v1145, 16
      %v1191 = vrot.slane %v1189, 5
      %v1192 = vsel %vm236, %v1187, %v1191
      %v1194 = vshrl.u32 %v1129, 16
      %v1196 = vrot.slane %v1194, 4
      %v1197 = vshll.u32 %v1129, 16
      %v1199 = vrot.slane %v1197, 5
      %v1200 = vor.u32 %v1196, %v1199
      %v1201 = vrot.slane %v1200, 4
      %v1203 = vshll.u32 %v1146, 16
      %v1205 = vrot.slane %v1203, 5
      %v1206 = vsel %vm236, %v1201, %v1205
      %v1208 = vshrl.u32 %v1130, 16
      %v1210 = vrot.slane %v1208, 4
      %v1211 = vshll.u32 %v1130, 16
      %v1213 = vrot.slane %v1211, 5
      %v1214 = vor.u32 %v1210, %v1213
      %v1215 = vrot.slane %v1214, 4
      %v1217 = vshll.u32 %v1147, 16
      %v1219 = vrot.slane %v1217, 5
      %v1220 = vsel %vm236, %v1215, %v1219
      %v1222 = vshrl.u32 %v1131, 16
      %v1224 = vrot.slane %v1222, 4
      %v1225 = vshll.u32 %v1131, 16
      %v1227 = vrot.slane %v1225, 5
      %v1228 = vor.u32 %v1224, %v1227
      %v1229 = vrot.slane %v1228, 4
      %v1231 = vshll.u32 %v1148, 16
      %v1233 = vrot.slane %v1231, 5
      %v1234 = vsel %vm236, %v1229, %v1233
      %v1236 = vshrl.u32 %v1132, 16
      %v1238 = vrot.slane %v1236, 4
      %v1239 = vshll.u32 %v1132, 16
      %v1241 = vrot.slane %v1239, 5
      %v1242 = vor.u32 %v1238, %v1241
      %v1243 = vrot.slane %v1242, 4
      %v1245 = vshll.u32 %v1149, 16
      %v1247 = vrot.slane %v1245, 5
      %v1248 = vsel %vm236, %v1243, %v1247
      %v1250 = vshrl.u32 %v1133, 16
      %v1252 = vrot.slane %v1250, 4
      %v1253 = vshll.u32 %v1133, 16
      %v1255 = vrot.slane %v1253, 5
      %v1256 = vor.u32 %v1252, %v1255
      %v1257 = vrot.slane %v1256, 4
      %v1259 = vshll.u32 %v1150, 16
      %v1261 = vrot.slane %v1259, 5
      %v1262 = vsel %vm236, %v1257, %v1261
      %v1263 = vld [vmem:[%s1134 + $0x4] sm:$0x1]
      %v1264 = vld [vmem:[%s1134 + $0xc] sm:$0x1]
      %v1265 = vld [vmem:[%s1134 + $0x14] sm:$0x1]
      %v1266 = vld [vmem:[%s1134 + $0x1c] sm:$0x1]
      %v1267 = vld [vmem:[%s1134 + $0x24] sm:$0x1]
      %v1268 = vld [vmem:[%s1134 + $0x2c] sm:$0x1]
      %v1269 = vld [vmem:[%s1134 + $0x34] sm:$0x1]
      %v1270 = vld [vmem:[%s1134 + $0x3c] sm:$0x1]
      %v1272 = vshrl.u32 %v1135, 16
      %v1274 = vrot.slane %v1272, 4
      %v1275 = vshll.u32 %v1135, 16
      %v1277 = vrot.slane %v1275, 5
      %v1278 = vor.u32 %v1274, %v1277
      %v1279 = vrot.slane %v1278, 4
      %v1281 = vshll.u32 %v1263, 16
      %v1283 = vrot.slane %v1281, 5
      %v1284 = vsel %vm236, %v1279, %v1283
      %v1286 = vshrl.u32 %v1136, 16
      %v1288 = vrot.slane %v1286, 4
      %v1289 = vshll.u32 %v1136, 16
      %v1291 = vrot.slane %v1289, 5
      %v1292 = vor.u32 %v1288, %v1291
      %v1293 = vrot.slane %v1292, 4
      %v1295 = vshll.u32 %v1264, 16
      %v1297 = vrot.slane %v1295, 5
      %v1298 = vsel %vm236, %v1293, %v1297
      %v1300 = vshrl.u32 %v1137, 16
      %v1302 = vrot.slane %v1300, 4
      %v1303 = vshll.u32 %v1137, 16
      %v1305 = vrot.slane %v1303, 5
      %v1306 = vor.u32 %v1302, %v1305
      %v1307 = vrot.slane %v1306, 4
      %v1309 = vshll.u32 %v1265, 16
      %v1311 = vrot.slane %v1309, 5
      %v1312 = vsel %vm236, %v1307, %v1311
      %v1314 = vshrl.u32 %v1138, 16
      %v1316 = vrot.slane %v1314, 4
      %v1317 = vshll.u32 %v1138, 16
      %v1319 = vrot.slane %v1317, 5
      %v1320 = vor.u32 %v1316, %v1319
      %v1321 = vrot.slane %v1320, 4
      %v1323 = vshll.u32 %v1266, 16
      %v1325 = vrot.slane %v1323, 5
      %v1326 = vsel %vm236, %v1321, %v1325
      %v1328 = vshrl.u32 %v1139, 16
      %v1330 = vrot.slane %v1328, 4
      %v1331 = vshll.u32 %v1139, 16
      %v1333 = vrot.slane %v1331, 5
      %v1334 = vor.u32 %v1330, %v1333
      %v1335 = vrot.slane %v1334, 4
      %v1337 = vshll.u32 %v1267, 16
      %v1339 = vrot.slane %v1337, 5
      %v1340 = vsel %vm236, %v1335, %v1339
      %v1342 = vshrl.u32 %v1140, 16
      %v1344 = vrot.slane %v1342, 4
      %v1345 = vshll.u32 %v1140, 16
      %v1347 = vrot.slane %v1345, 5
      %v1348 = vor.u32 %v1344, %v1347
      %v1349 = vrot.slane %v1348, 4
      %v1351 = vshll.u32 %v1268, 16
      %v1353 = vrot.slane %v1351, 5
      %v1354 = vsel %vm236, %v1349, %v1353
      %v1356 = vshrl.u32 %v1141, 16
      %v1358 = vrot.slane %v1356, 4
      %v1359 = vshll.u32 %v1141, 16
      %v1361 = vrot.slane %v1359, 5
      %v1362 = vor.u32 %v1358, %v1361
      %v1363 = vrot.slane %v1362, 4
      %v1365 = vshll.u32 %v1269, 16
      %v1367 = vrot.slane %v1365, 5
      %v1368 = vsel %vm236, %v1363, %v1367
      %v1370 = vshrl.u32 %v1142, 16
      %v1372 = vrot.slane %v1370, 4
      %v1373 = vshll.u32 %v1142, 16
      %v1375 = vrot.slane %v1373, 5
      %v1376 = vor.u32 %v1372, %v1375
      %v1377 = vrot.slane %v1376, 4
      %v1379 = vshll.u32 %v1270, 16
      %v1381 = vrot.slane %v1379, 5
      %v1382 = vsel %vm236, %v1377, %v1381
      %v1391 = vunpack.c.l.b16 %v1126
      %v1392 = vunpack.c.l.b16 %v1127
      %v1393 = vunpack.c.l.b16 %v1128
      %v1394 = vunpack.c.l.b16 %v1129
      %v1395 = vunpack.c.l.b16 %v1130
      %v1396 = vunpack.c.l.b16 %v1131
      %v1397 = vunpack.c.l.b16 %v1132
      %v1398 = vunpack.c.l.b16 %v1133
      %v1399 = vpack.c.b16 %v1392, %v1391
      %v1400 = vpack.c.b16 %v1394, %v1393
      %v1401 = vpack.c.b16 %v1396, %v1395
      %v1402 = vpack.c.b16 %v1398, %v1397
      %v1411 = vunpack.c.l.b16 %v1135
      %v1412 = vunpack.c.l.b16 %v1136
      %v1413 = vunpack.c.l.b16 %v1137
      %v1414 = vunpack.c.l.b16 %v1138
      %v1415 = vunpack.c.l.b16 %v1139
      %v1416 = vunpack.c.l.b16 %v1140
      %v1417 = vunpack.c.l.b16 %v1141
      %v1418 = vunpack.c.l.b16 %v1142
      %v1419 = vpack.c.b16 %v1412, %v1411
      %v1420 = vpack.c.b16 %v1414, %v1413
      %v1421 = vpack.c.b16 %v1416, %v1415
      %v1422 = vpack.c.b16 %v1418, %v1417
      %1423 = vrot.lane.b32.xlu0 %v1419, 4
      %v1424 = vpop.permute.xlu0 %1423
      %1425 = vrot.lane.b32.xlu0 %v1420, 4
      %v1426 = vpop.permute.xlu0 %1425
      %1427 = vrot.lane.b32.xlu0 %v1421, 4
      %v1428 = vpop.permute.xlu0 %1427
      %1429 = vrot.lane.b32.xlu0 %v1422, 4
      %v1430 = vpop.permute.xlu0 %1429
      %v1431 = vunpack.c.l.b16 %v1164
      %v1432 = vunpack.c.l.b16 %v1178
      %v1433 = vunpack.c.l.b16 %v1192
      %v1434 = vunpack.c.l.b16 %v1206
      %v1435 = vunpack.c.l.b16 %v1220
      %v1436 = vunpack.c.l.b16 %v1234
      %v1437 = vunpack.c.l.b16 %v1248
      %v1438 = vunpack.c.l.b16 %v1262
      %v1439 = vpack.c.b16 %v1432, %v1431
      %v1440 = vpack.c.b16 %v1434, %v1433
      %v1441 = vpack.c.b16 %v1436, %v1435
      %v1442 = vpack.c.b16 %v1438, %v1437
      %1443 = vrot.lane.b32.xlu0 %v1439, 8
      %v1444 = vpop.permute.xlu0 %1443
      %1445 = vrot.lane.b32.xlu0 %v1440, 8
      %v1446 = vpop.permute.xlu0 %1445
      %1447 = vrot.lane.b32.xlu0 %v1441, 8
      %v1448 = vpop.permute.xlu0 %1447
      %1449 = vrot.lane.b32.xlu0 %v1442, 8
      %v1450 = vpop.permute.xlu0 %1449
      %v1451 = vunpack.c.l.b16 %v1284
      %v1452 = vunpack.c.l.b16 %v1298
      %v1453 = vunpack.c.l.b16 %v1312
      %v1454 = vunpack.c.l.b16 %v1326
      %v1455 = vunpack.c.l.b16 %v1340
      %v1456 = vunpack.c.l.b16 %v1354
      %v1457 = vunpack.c.l.b16 %v1368
      %v1458 = vunpack.c.l.b16 %v1382
      %v1459 = vpack.c.b16 %v1452, %v1451
      %v1460 = vpack.c.b16 %v1454, %v1453
      %v1461 = vpack.c.b16 %v1456, %v1455
      %v1462 = vpack.c.b16 %v1458, %v1457
      %1463 = vrot.lane.b32.xlu0 %v1459, 12
      %v1464 = vpop.permute.xlu0 %1463
      %1465 = vrot.lane.b32.xlu0 %v1460, 12
      %v1466 = vpop.permute.xlu0 %1465
      %1467 = vrot.lane.b32.xlu0 %v1461, 12
      %v1468 = vpop.permute.xlu0 %1467
      %1469 = vrot.lane.b32.xlu0 %v1462, 12
      %v1470 = vpop.permute.xlu0 %1469
      %v1473 = vsel %vm557, %v1399, %v1424
      %v1476 = vsel %vm557, %v1400, %v1426
      %v1479 = vsel %vm557, %v1401, %v1428
      %v1482 = vsel %vm557, %v1402, %v1430
      %v1484 = vsel %vm570, %v1473, %v1444
      %v1486 = vsel %vm570, %v1476, %v1446
      %v1488 = vsel %vm570, %v1479, %v1448
      %v1490 = vsel %vm570, %v1482, %v1450
      %v1492 = vsel %vm579, %v1484, %v1464
      %v1494 = vsel %vm579, %v1486, %v1466
      %v1496 = vsel %vm579, %v1488, %v1468
      %v1498 = vsel %vm579, %v1490, %v1470
      %v1499 = vld [vmem:[%s1 + $0x10] sm:$0xf]
      %v1500 = vld [vmem:[%s1 + $0x14] sm:$0xf]
      %v1503 = vunpack.c.l.b16 %v1499
      %v1504 = vunpack.c.l.b16 %v1500
      %v1505 = vpack.c.b16 %v1504, %v1503
      %v1507 = vsel %vm972, %v1492, 0
      %v1509 = vsel %vm972, %v1494, 0
      %v1511 = vsel %vm972, %v1496, 0
      %v1513 = vsel %vm972, %v1498, 0
      %1515 = vmatprep.subr.bf16.mxu0 0
      %1516 = vmatpush1.bf16.msra.mxu0 %v1505
      %1517 = vmatprep.subr.bf16.mxu0 0
      %1518 = vmatpush1.bf16.msra.mxu0 0
      %1519 = vmatprep.subr.bf16.mxu0 0
      %1520 = vmatpush1.bf16.msra.mxu0 0
      %1521 = vmatprep.subr.bf16.mxu0 0
      %1522 = vmatpush1.bf16.msra.mxu0 0
      %1523 = vmatprep.subr.bf16.mxu0 0
      %1524 = vmatpush1.bf16.msra.mxu0 0
      %1525 = vmatprep.subr.bf16.mxu0 0
      %1526 = vmatpush1.bf16.msra.mxu0 0
      %1527 = vmatprep.subr.bf16.mxu0 0
      %1528 = vmatpush1.bf16.msra.mxu0 0
      %1529 = vmatprep.subr.bf16.mxu0 0
      %1530 = vmatpush1.bf16.msra.mxu0 0
      %1531 = vmatprep.subr.bf16.mxu0 0
      %1532 = vmatpush1.bf16.msra.mxu0 0
      %1533 = vmatprep.subr.bf16.mxu0 0
      %1534 = vmatpush1.bf16.msra.mxu0 0
      %1535 = vmatprep.subr.bf16.mxu0 0
      %1536 = vmatpush1.bf16.msra.mxu0 0
      %1537 = vmatprep.subr.bf16.mxu0 0
      %1538 = vmatpush1.bf16.msra.mxu0 0
      %1539 = vmatprep.subr.bf16.mxu0 0
      %1540 = vmatpush1.bf16.msra.mxu0 0
      %1541 = vmatprep.subr.bf16.mxu0 0
      %1542 = vmatpush1.bf16.msra.mxu0 0
      %1543 = vmatprep.subr.bf16.mxu0 0
      %1544 = vmatpush1.bf16.msra.mxu0 0
      %1545 = vmatprep.subr.bf16.mxu0 0
      %1546 = vmatpush1.bf16.msra.mxu0 0
      %1547 = vmatprep.mubr.bf16.mxu0 0
      %1548 = vmatmul.mubr.bf16.gmra.mrb[0].mxu0 %v1507
      %v1549 = vpop.f32.mrb[0].mxu0
      %v1550 = vadd.f32 0.0, %v1549
      %v1551 = vpop.f32.mrb[0].mxu0
      %v1552 = vpop.f32.mrb[0].mxu0
      %v1553 = vadd.f32 0.0, %v1552
      %v1554 = vpop.f32.mrb[0].mxu0
      %1555 = vmatprep.mubr.bf16.mxu0 0
      %1556 = vmatmul.mubr.bf16.gmra.mrb[0].mxu0 %v1509
      %v1557 = vpop.f32.mrb[0].mxu0
      %v1558 = vadd.f32 0.0, %v1557
      %v1559 = vpop.f32.mrb[0].mxu0
      %v1560 = vpop.f32.mrb[0].mxu0
      %v1561 = vadd.f32 0.0, %v1560
      %v1562 = vpop.f32.mrb[0].mxu0
      %1563 = vmatprep.mubr.bf16.mxu0 0
      %1564 = vmatmul.mubr.bf16.gmra.mrb[0].mxu0 %v1511
      %v1565 = vpop.f32.mrb[0].mxu0
      %v1566 = vadd.f32 0.0, %v1565
      %v1567 = vpop.f32.mrb[0].mxu0
      %v1568 = vpop.f32.mrb[0].mxu0
      %v1569 = vadd.f32 0.0, %v1568
      %v1570 = vpop.f32.mrb[0].mxu0
      %1571 = vmatprep.mubr.bf16.mxu0 0
      %1572 = vmatmul.mubr.bf16.gmra.mrb[0].mxu0 %v1513
      %v1573 = vpop.f32.mrb[0].mxu0
      %v1574 = vadd.f32 0.0, %v1573
      %v1575 = vpop.f32.mrb[0].mxu0
      %v1576 = vpop.f32.mrb[0].mxu0
      %v1577 = vadd.f32 0.0, %v1576
      %v1578 = vpop.f32.mrb[0].mxu0
      %1579 = vdwg.mxu0
      %v1580 = vadd.f32 %v1095, %v1550
      %v1581 = vadd.f32 %v1098, %v1553
      %v1582 = vadd.f32 %v1103, %v1558
      %v1583 = vadd.f32 %v1106, %v1561
      %v1584 = vadd.f32 %v1111, %v1566
      %v1585 = vadd.f32 %v1114, %v1569
      %v1586 = vadd.f32 %v1119, %v1574
      %v1587 = vadd.f32 %v1122, %v1577
      %s1588 = scalar_lea.vmem %s197, 152
      %v1589 = vld [vmem:[%s1588] sm:$0xf]
      %v1590 = vld [vmem:[%s1588 + $0x8] sm:$0xf]
      %v1591 = vld [vmem:[%s1588 + $0x10] sm:$0xf]
      %v1592 = vld [vmem:[%s1588 + $0x18] sm:$0xf]
      %v1593 = vld [vmem:[%s1588 + $0x20] sm:$0xf]
      %v1594 = vld [vmem:[%s1588 + $0x28] sm:$0xf]
      %v1595 = vld [vmem:[%s1588 + $0x30] sm:$0xf]
      %v1596 = vld [vmem:[%s1588 + $0x38] sm:$0xf]
      %s1597 = scalar_lea.vmem %s197, 224
      %v1598 = vld [vmem:[%s1597] sm:$0xf]
      %v1599 = vld [vmem:[%s1597 + $0x8] sm:$0xf]
      %v1600 = vld [vmem:[%s1597 + $0x10] sm:$0xf]
      %v1601 = vld [vmem:[%s1597 + $0x18] sm:$0xf]
      %v1602 = vld [vmem:[%s1597 + $0x20] sm:$0xf]
      %v1603 = vld [vmem:[%s1597 + $0x28] sm:$0xf]
      %v1604 = vld [vmem:[%s1597 + $0x30] sm:$0xf]
      %v1605 = vld [vmem:[%s1597 + $0x38] sm:$0xf]
      %v1606 = vld [vmem:[%s1588 + $0x4] sm:$0x1]
      %v1607 = vld [vmem:[%s1588 + $0xc] sm:$0x1]
      %v1608 = vld [vmem:[%s1588 + $0x14] sm:$0x1]
      %v1609 = vld [vmem:[%s1588 + $0x1c] sm:$0x1]
      %v1610 = vld [vmem:[%s1588 + $0x24] sm:$0x1]
      %v1611 = vld [vmem:[%s1588 + $0x2c] sm:$0x1]
      %v1612 = vld [vmem:[%s1588 + $0x34] sm:$0x1]
      %v1613 = vld [vmem:[%s1588 + $0x3c] sm:$0x1]
      %v1615 = vshrl.u32 %v1589, 16
      %v1617 = vrot.slane %v1615, 4
      %v1618 = vshll.u32 %v1589, 16
      %v1620 = vrot.slane %v1618, 5
      %v1621 = vor.u32 %v1617, %v1620
      %v1622 = vrot.slane %v1621, 4
      %v1624 = vshll.u32 %v1606, 16
      %v1626 = vrot.slane %v1624, 5
      %v1627 = vsel %vm236, %v1622, %v1626
      %v1629 = vshrl.u32 %v1590, 16
      %v1631 = vrot.slane %v1629, 4
      %v1632 = vshll.u32 %v1590, 16
      %v1634 = vrot.slane %v1632, 5
      %v1635 = vor.u32 %v1631, %v1634
      %v1636 = vrot.slane %v1635, 4
      %v1638 = vshll.u32 %v1607, 16
      %v1640 = vrot.slane %v1638, 5
      %v1641 = vsel %vm236, %v1636, %v1640
      %v1643 = vshrl.u32 %v1591, 16
      %v1645 = vrot.slane %v1643, 4
      %v1646 = vshll.u32 %v1591, 16
      %v1648 = vrot.slane %v1646, 5
      %v1649 = vor.u32 %v1645, %v1648
      %v1650 = vrot.slane %v1649, 4
      %v1652 = vshll.u32 %v1608, 16
      %v1654 = vrot.slane %v1652, 5
      %v1655 = vsel %vm236, %v1650, %v1654
      %v1657 = vshrl.u32 %v1592, 16
      %v1659 = vrot.slane %v1657, 4
      %v1660 = vshll.u32 %v1592, 16
      %v1662 = vrot.slane %v1660, 5
      %v1663 = vor.u32 %v1659, %v1662
      %v1664 = vrot.slane %v1663, 4
      %v1666 = vshll.u32 %v1609, 16
      %v1668 = vrot.slane %v1666, 5
      %v1669 = vsel %vm236, %v1664, %v1668
      %v1671 = vshrl.u32 %v1593, 16
      %v1673 = vrot.slane %v1671, 4
      %v1674 = vshll.u32 %v1593, 16
      %v1676 = vrot.slane %v1674, 5
      %v1677 = vor.u32 %v1673, %v1676
      %v1678 = vrot.slane %v1677, 4
      %v1680 = vshll.u32 %v1610, 16
      %v1682 = vrot.slane %v1680, 5
      %v1683 = vsel %vm236, %v1678, %v1682
      %v1685 = vshrl.u32 %v1594, 16
      %v1687 = vrot.slane %v1685, 4
      %v1688 = vshll.u32 %v1594, 16
      %v1690 = vrot.slane %v1688, 5
      %v1691 = vor.u32 %v1687, %v1690
      %v1692 = vrot.slane %v1691, 4
      %v1694 = vshll.u32 %v1611, 16
      %v1696 = vrot.slane %v1694, 5
      %v1697 = vsel %vm236, %v1692, %v1696
      %v1699 = vshrl.u32 %v1595, 16
      %v1701 = vrot.slane %v1699, 4
      %v1702 = vshll.u32 %v1595, 16
      %v1704 = vrot.slane %v1702, 5
      %v1705 = vor.u32 %v1701, %v1704
      %v1706 = vrot.slane %v1705, 4
      %v1708 = vshll.u32 %v1612, 16
      %v1710 = vrot.slane %v1708, 5
      %v1711 = vsel %vm236, %v1706, %v1710
      %v1713 = vshrl.u32 %v1596, 16
      %v1715 = vrot.slane %v1713, 4
      %v1716 = vshll.u32 %v1596, 16
      %v1718 = vrot.slane %v1716, 5
      %v1719 = vor.u32 %v1715, %v1718
      %v1720 = vrot.slane %v1719, 4
      %v1722 = vshll.u32 %v1613, 16
      %v1724 = vrot.slane %v1722, 5
      %v1725 = vsel %vm236, %v1720, %v1724
      %v1726 = vld [vmem:[%s1597 + $0x4] sm:$0x1]
      %v1727 = vld [vmem:[%s1597 + $0xc] sm:$0x1]
      %v1728 = vld [vmem:[%s1597 + $0x14] sm:$0x1]
      %v1729 = vld [vmem:[%s1597 + $0x1c] sm:$0x1]
      %v1730 = vld [vmem:[%s1597 + $0x24] sm:$0x1]
      %v1731 = vld [vmem:[%s1597 + $0x2c] sm:$0x1]
      %v1732 = vld [vmem:[%s1597 + $0x34] sm:$0x1]
      %v1733 = vld [vmem:[%s1597 + $0x3c] sm:$0x1]
      %v1735 = vshrl.u32 %v1598, 16
      %v1737 = vrot.slane %v1735, 4
      %v1738 = vshll.u32 %v1598, 16
      %v1740 = vrot.slane %v1738, 5
      %v1741 = vor.u32 %v1737, %v1740
      %v1742 = vrot.slane %v1741, 4
      %v1744 = vshll.u32 %v1726, 16
      %v1746 = vrot.slane %v1744, 5
      %v1747 = vsel %vm236, %v1742, %v1746
      %v1749 = vshrl.u32 %v1599, 16
      %v1751 = vrot.slane %v1749, 4
      %v1752 = vshll.u32 %v1599, 16
      %v1754 = vrot.slane %v1752, 5
      %v1755 = vor.u32 %v1751, %v1754
      %v1756 = vrot.slane %v1755, 4
      %v1758 = vshll.u32 %v1727, 16
      %v1760 = vrot.slane %v1758, 5
      %v1761 = vsel %vm236, %v1756, %v1760
      %v1763 = vshrl.u32 %v1600, 16
      %v1765 = vrot.slane %v1763, 4
      %v1766 = vshll.u32 %v1600, 16
      %v1768 = vrot.slane %v1766, 5
      %v1769 = vor.u32 %v1765, %v1768
      %v1770 = vrot.slane %v1769, 4
      %v1772 = vshll.u32 %v1728, 16
      %v1774 = vrot.slane %v1772, 5
      %v1775 = vsel %vm236, %v1770, %v1774
      %v1777 = vshrl.u32 %v1601, 16
      %v1779 = vrot.slane %v1777, 4
      %v1780 = vshll.u32 %v1601, 16
      %v1782 = vrot.slane %v1780, 5
      %v1783 = vor.u32 %v1779, %v1782
      %v1784 = vrot.slane %v1783, 4
      %v1786 = vshll.u32 %v1729, 16
      %v1788 = vrot.slane %v1786, 5
      %v1789 = vsel %vm236, %v1784, %v1788
      %v1791 = vshrl.u32 %v1602, 16
      %v1793 = vrot.slane %v1791, 4
      %v1794 = vshll.u32 %v1602, 16
      %v1796 = vrot.slane %v1794, 5
      %v1797 = vor.u32 %v1793, %v1796
      %v1798 = vrot.slane %v1797, 4
      %v1800 = vshll.u32 %v1730, 16
      %v1802 = vrot.slane %v1800, 5
      %v1803 = vsel %vm236, %v1798, %v1802
      %v1805 = vshrl.u32 %v1603, 16
      %v1807 = vrot.slane %v1805, 4
      %v1808 = vshll.u32 %v1603, 16
      %v1810 = vrot.slane %v1808, 5
      %v1811 = vor.u32 %v1807, %v1810
      %v1812 = vrot.slane %v1811, 4
      %v1814 = vshll.u32 %v1731, 16
      %v1816 = vrot.slane %v1814, 5
      %v1817 = vsel %vm236, %v1812, %v1816
      %v1819 = vshrl.u32 %v1604, 16
      %v1821 = vrot.slane %v1819, 4
      %v1822 = vshll.u32 %v1604, 16
      %v1824 = vrot.slane %v1822, 5
      %v1825 = vor.u32 %v1821, %v1824
      %v1826 = vrot.slane %v1825, 4
      %v1828 = vshll.u32 %v1732, 16
      %v1830 = vrot.slane %v1828, 5
      %v1831 = vsel %vm236, %v1826, %v1830
      %v1833 = vshrl.u32 %v1605, 16
      %v1835 = vrot.slane %v1833, 4
      %v1836 = vshll.u32 %v1605, 16
      %v1838 = vrot.slane %v1836, 5
      %v1839 = vor.u32 %v1835, %v1838
      %v1840 = vrot.slane %v1839, 4
      %v1842 = vshll.u32 %v1733, 16
      %v1844 = vrot.slane %v1842, 5
      %v1845 = vsel %vm236, %v1840, %v1844
      %v1854 = vunpack.c.l.b16 %v1589
      %v1855 = vunpack.c.l.b16 %v1590
      %v1856 = vunpack.c.l.b16 %v1591
      %v1857 = vunpack.c.l.b16 %v1592
      %v1858 = vunpack.c.l.b16 %v1593
      %v1859 = vunpack.c.l.b16 %v1594
      %v1860 = vunpack.c.l.b16 %v1595
      %v1861 = vunpack.c.l.b16 %v1596
      %v1862 = vpack.c.b16 %v1855, %v1854
      %v1863 = vpack.c.b16 %v1857, %v1856
      %v1864 = vpack.c.b16 %v1859, %v1858
      %v1865 = vpack.c.b16 %v1861, %v1860
      %v1874 = vunpack.c.l.b16 %v1598
      %v1875 = vunpack.c.l.b16 %v1599
      %v1876 = vunpack.c.l.b16 %v1600
      %v1877 = vunpack.c.l.b16 %v1601
      %v1878 = vunpack.c.l.b16 %v1602
      %v1879 = vunpack.c.l.b16 %v1603
      %v1880 = vunpack.c.l.b16 %v1604
      %v1881 = vunpack.c.l.b16 %v1605
      %v1882 = vpack.c.b16 %v1875, %v1874
      %v1883 = vpack.c.b16 %v1877, %v1876
      %v1884 = vpack.c.b16 %v1879, %v1878
      %v1885 = vpack.c.b16 %v1881, %v1880
      %1886 = vrot.lane.b32.xlu0 %v1882, 4
      %v1887 = vpop.permute.xlu0 %1886
      %1888 = vrot.lane.b32.xlu0 %v1883, 4
      %v1889 = vpop.permute.xlu0 %1888
      %1890 = vrot.lane.b32.xlu0 %v1884, 4
      %v1891 = vpop.permute.xlu0 %1890
      %1892 = vrot.lane.b32.xlu0 %v1885, 4
      %v1893 = vpop.permute.xlu0 %1892
      %v1894 = vunpack.c.l.b16 %v1627
      %v1895 = vunpack.c.l.b16 %v1641
      %v1896 = vunpack.c.l.b16 %v1655
      %v1897 = vunpack.c.l.b16 %v1669
      %v1898 = vunpack.c.l.b16 %v1683
      %v1899 = vunpack.c.l.b16 %v1697
      %v1900 = vunpack.c.l.b16 %v1711
      %v1901 = vunpack.c.l.b16 %v1725
      %v1902 = vpack.c.b16 %v1895, %v1894
      %v1903 = vpack.c.b16 %v1897, %v1896
      %v1904 = vpack.c.b16 %v1899, %v1898
      %v1905 = vpack.c.b16 %v1901, %v1900
      %1906 = vrot.lane.b32.xlu0 %v1902, 8
      %v1907 = vpop.permute.xlu0 %1906
      %1908 = vrot.lane.b32.xlu0 %v1903, 8
      %v1909 = vpop.permute.xlu0 %1908
      %1910 = vrot.lane.b32.xlu0 %v1904, 8
      %v1911 = vpop.permute.xlu0 %1910
      %1912 = vrot.lane.b32.xlu0 %v1905, 8
      %v1913 = vpop.permute.xlu0 %1912
      %v1914 = vunpack.c.l.b16 %v1747
      %v1915 = vunpack.c.l.b16 %v1761
      %v1916 = vunpack.c.l.b16 %v1775
      %v1917 = vunpack.c.l.b16 %v1789
      %v1918 = vunpack.c.l.b16 %v1803
      %v1919 = vunpack.c.l.b16 %v1817
      %v1920 = vunpack.c.l.b16 %v1831
      %v1921 = vunpack.c.l.b16 %v1845
      %v1922 = vpack.c.b16 %v1915, %v1914
      %v1923 = vpack.c.b16 %v1917, %v1916
      %v1924 = vpack.c.b16 %v1919, %v1918
      %v1925 = vpack.c.b16 %v1921, %v1920
      %1926 = vrot.lane.b32.xlu0 %v1922, 12
      %v1927 = vpop.permute.xlu0 %1926
      %1928 = vrot.lane.b32.xlu0 %v1923, 12
      %v1929 = vpop.permute.xlu0 %1928
      %1930 = vrot.lane.b32.xlu0 %v1924, 12
      %v1931 = vpop.permute.xlu0 %1930
      %1932 = vrot.lane.b32.xlu0 %v1925, 12
      %v1933 = vpop.permute.xlu0 %1932
      %v1936 = vsel %vm557, %v1862, %v1887
      %v1939 = vsel %vm557, %v1863, %v1889
      %v1942 = vsel %vm557, %v1864, %v1891
      %v1945 = vsel %vm557, %v1865, %v1893
      %v1947 = vsel %vm570, %v1936, %v1907
      %v1949 = vsel %vm570, %v1939, %v1909
      %v1951 = vsel %vm570, %v1942, %v1911
      %v1953 = vsel %vm570, %v1945, %v1913
      %v1955 = vsel %vm579, %v1947, %v1927
      %v1957 = vsel %vm579, %v1949, %v1929
      %v1959 = vsel %vm579, %v1951, %v1931
      %v1961 = vsel %vm579, %v1953, %v1933
      %v1962 = vld [vmem:[%s1 + $0x18] sm:$0xf]
      %v1963 = vld [vmem:[%s1 + $0x1c] sm:$0xf]
      %v1966 = vunpack.c.l.b16 %v1962
      %v1967 = vunpack.c.l.b16 %v1963
      %v1968 = vpack.c.b16 %v1967, %v1966
      %v1970 = vsel %vm972, %v1955, 0
      %v1972 = vsel %vm972, %v1957, 0
      %v1974 = vsel %vm972, %v1959, 0
      %v1976 = vsel %vm972, %v1961, 0
      %1978 = vmatprep.subr.bf16.mxu0 0
      %1979 = vmatpush1.bf16.msra.mxu0 %v1968
      %1980 = vmatprep.subr.bf16.mxu0 0
      %1981 = vmatpush1.bf16.msra.mxu0 0
      %1982 = vmatprep.subr.bf16.mxu0 0
      %1983 = vmatpush1.bf16.msra.mxu0 0
      %1984 = vmatprep.subr.bf16.mxu0 0
      %1985 = vmatpush1.bf16.msra.mxu0 0
      %1986 = vmatprep.subr.bf16.mxu0 0
      %1987 = vmatpush1.bf16.msra.mxu0 0
      %1988 = vmatprep.subr.bf16.mxu0 0
      %1989 = vmatpush1.bf16.msra.mxu0 0
      %1990 = vmatprep.subr.bf16.mxu0 0
      %1991 = vmatpush1.bf16.msra.mxu0 0
      %1992 = vmatprep.subr.bf16.mxu0 0
      %1993 = vmatpush1.bf16.msra.mxu0 0
      %1994 = vmatprep.subr.bf16.mxu0 0
      %1995 = vmatpush1.bf16.msra.mxu0 0
      %1996 = vmatprep.subr.bf16.mxu0 0
      %1997 = vmatpush1.bf16.msra.mxu0 0
      %1998 = vmatprep.subr.bf16.mxu0 0
      %1999 = vmatpush1.bf16.msra.mxu0 0
      %2000 = vmatprep.subr.bf16.mxu0 0
      %2001 = vmatpush1.bf16.msra.mxu0 0
      %2002 = vmatprep.subr.bf16.mxu0 0
      %2003 = vmatpush1.bf16.msra.mxu0 0
      %2004 = vmatprep.subr.bf16.mxu0 0
      %2005 = vmatpush1.bf16.msra.mxu0 0
      %2006 = vmatprep.subr.bf16.mxu0 0
      %2007 = vmatpush1.bf16.msra.mxu0 0
      %2008 = vmatprep.subr.bf16.mxu0 0
      %2009 = vmatpush1.bf16.msra.mxu0 0
      %2010 = vmatprep.mubr.bf16.mxu0 0
      %2011 = vmatmul.mubr.bf16.gmra.mrb[0].mxu0 %v1970
      %v2012 = vpop.f32.mrb[0].mxu0
      %v2013 = vadd.f32 0.0, %v2012
      %v2014 = vpop.f32.mrb[0].mxu0
      %v2015 = vpop.f32.mrb[0].mxu0
      %v2016 = vadd.f32 0.0, %v2015
      %v2017 = vpop.f32.mrb[0].mxu0
      %2018 = vmatprep.mubr.bf16.mxu0 0
      %2019 = vmatmul.mubr.bf16.gmra.mrb[0].mxu0 %v1972
      %v2020 = vpop.f32.mrb[0].mxu0
      %v2021 = vadd.f32 0.0, %v2020
      %v2022 = vpop.f32.mrb[0].mxu0
      %v2023 = vpop.f32.mrb[0].mxu0
      %v2024 = vadd.f32 0.0, %v2023
      %v2025 = vpop.f32.mrb[0].mxu0
      %2026 = vmatprep.mubr.bf16.mxu0 0
      %2027 = vmatmul.mubr.bf16.gmra.mrb[0].mxu0 %v1974
      %v2028 = vpop.f32.mrb[0].mxu0
      %v2029 = vadd.f32 0.0, %v2028
      %v2030 = vpop.f32.mrb[0].mxu0
      %v2031 = vpop.f32.mrb[0].mxu0
      %v2032 = vadd.f32 0.0, %v2031
      %v2033 = vpop.f32.mrb[0].mxu0
      %2034 = vmatprep.mubr.bf16.mxu0 0
      %2035 = vmatmul.mubr.bf16.gmra.mrb[0].mxu0 %v1976
      %v2036 = vpop.f32.mrb[0].mxu0
      %v2037 = vadd.f32 0.0, %v2036
      %v2038 = vpop.f32.mrb[0].mxu0
      %v2039 = vpop.f32.mrb[0].mxu0
      %v2040 = vadd.f32 0.0, %v2039
      %v2041 = vpop.f32.mrb[0].mxu0
      %2042 = vdwg.mxu0
      %v2043 = vadd.f32 %v1580, %v2013
      %v2044 = vadd.f32 %v1581, %v2016
      %v2045 = vadd.f32 %v1582, %v2021
      %v2046 = vadd.f32 %v1583, %v2024
      %v2047 = vadd.f32 %v1584, %v2029
      %v2048 = vadd.f32 %v1585, %v2032
      %v2049 = vadd.f32 %v1586, %v2037
      %v2050 = vadd.f32 %v1587, %v2040
      %v2051 = vld [vmem:[%s2] sm:$0x1]
      %v2053 = vlaneseq
      %v2054 = vshrl.u32 %v2053, 7
      %v2055 = vsub.s32 0, %v2054
      %v2056 = vrot.slane %v2051, %v2055
      %v2058 = vadd.f32 %v2043, %v2056
      %v2059 = vadd.f32 %v2044, %v2056
      %v2060 = vadd.f32 %v2045, %v2056
      %v2061 = vadd.f32 %v2046, %v2056
      %v2062 = vadd.f32 %v2047, %v2056
      %v2063 = vadd.f32 %v2048, %v2056
      %v2064 = vadd.f32 %v2049, %v2056
      %v2065 = vadd.f32 %v2050, %v2056
      %2066 = vst.msk [vmem:[%s206] sm:$0xff] %vm557, %v2058
      %2067 = vst.msk [vmem:[%s206 + $0x8] sm:$0xff] %vm557, %v2059
      %2068 = vst.msk [vmem:[%s206 + $0x10] sm:$0xff] %vm557, %v2060
      %2069 = vst.msk [vmem:[%s206 + $0x18] sm:$0xff] %vm557, %v2061
      %2070 = vst.msk [vmem:[%s206 + $0x20] sm:$0xff] %vm557, %v2062
      %2071 = vst.msk [vmem:[%s206 + $0x28] sm:$0xff] %vm557, %v2063
      %2072 = vst.msk [vmem:[%s206 + $0x30] sm:$0xff] %vm557, %v2064
      %2073 = vst.msk [vmem:[%s206 + $0x38] sm:$0xff] %vm557, %v2065
      %s2074 = smul.u32 8, %s19
      %p2075 = scmp.lt.s32.totalorder %s18, 1
      %s2076 = scalar_select %p2075, %s18, 1
      %p2077 = scmp.lt.s32.totalorder %s2074, 7
      %s2078 = scalar_select %p2077, %s2074, 7
      %s2079 = smul.addr %s2076, 8
      %s2080 = sadd.s32 %s2078, %s2079
      %s2081 = smul.addr %s2080, 8
      %s2082 = scalar_lea.vmem %s3, %s2081
      // Predicated region
      $region33: #{tpu_custom_call.1} parent=31 // pred_check
        %p2083 = pneg %p116
      $region34: #{tpu_custom_call.1} parent=31 // pred_check_branch
        %2085 = sbr.rel (%p2083) target = $region36
      $region35: #{tpu_custom_call.1} parent=31 // pred_region
        %s2086 = smul.u32 8, %s19
      $region36: #{tpu_custom_call.1} parent=31 // pred_fallthru
        _
    $region32: #{tpu_custom_call.1} parent=5 // pred_fallthru
      _
    %p2087 = scmp.le.s32.totalorder 2, %s9
    // Predicated region
    $region37: #{tpu_custom_call.1} parent=5 // pred_check
      %p2088 = pneg %p2087
    $region38: #{tpu_custom_call.1} parent=5 // pred_check_branch
      %2090 = sbr.rel (%p2088) target = $region40
    $region39: #{tpu_custom_call.1} parent=5 // pred_region
      %s2091 = ssub.s32 %s9, 2
      // Predicated region
      $region41: #{tpu_custom_call.1} parent=39 // pred_check
        %p2092 = pneg %p122
      $region42: #{tpu_custom_call.1} parent=39 // pred_check_branch
        %2094 = sbr.rel (%p2092) target = $region44
      $region43: #{tpu_custom_call.1} parent=39 // pred_region
        %s2095 = smul.u32 8, %s21
        %p2096 = scmp.lt.s32.totalorder %s20, 1
        %s2097 = scalar_select %p2096, %s20, 1
        %p2098 = scmp.lt.s32.totalorder %s2095, 7
        %s2099 = scalar_select %p2098, %s2095, 7
        %s2100 = smul.addr %s2097, 8
        %s2101 = sadd.s32 %s2099, %s2100
        %s2102 = smul.addr %s2101, 8
        %s2103 = scalar_lea.vmem %s3, %s2102
      $region44: #{tpu_custom_call.1} parent=39 // pred_fallthru
        _
    $region40: #{tpu_custom_call.1} parent=5 // pred_fallthru
      _
  $region6: #{tpu_custom_call.1} parent=0 // loop_footer
    %s13 = sadd.s32 1, %s9
  $region7: #{tpu_custom_call.1} parent=0 // loop_footer_branch
    %8 = sbr.rel target = $region3
  $region8: #{tpu_custom_call.1} parent=0 // loop_exit
    _

</llo_original>
